<compile_context>
chip_gen: v7x
topology: tpu7x:2x2x1
jax: 0.10.0
libtpu: 0.0.40
codegen_flags: <defaults>
</compile_context>

<pallas_src>
import math

import jax
import jax.numpy as jnp
import numpy as np
from jax.experimental import pallas as pl
from jax.experimental.pallas import tpu as pltpu

# Model hyperparameters (match Encoder(dim, heads, dropout, window_size)).
DIM = 32
HEADS = 4
WINDOW = 8      # seq length == window_size (causal mask size)
BATCH = 2
HEAD_DIM = DIM // HEADS
LN_EPS = 1e-5
NEG_INF = -1e30
# Dropout layers are identity in eval mode -> omitted.


def encoder_kernel(x_ref, w_ref, b_ref, mask_ref, o_ref):
    """One shot over the whole flattened batch.

    x_ref:    (N, D)      flattened input rows, N = B*S (batch-major)
    w_ref:    (D, 6*D)    lane-concatenated [Wq*scale | Wk | Wv | Wo | W1 | W2],
                          each pre-transposed so y = x @ W
    b_ref:    (8, D)      rows [bq*scale, bk, bv, bo, b1, b2, gamma, beta]
    mask_ref: (N, N)      additive bias: 0 where attend allowed,
                          -1e30 where masked (cross-batch or non-causal)
    o_ref:    (N, D)
    """
    f32 = jnp.float32
    x = x_ref[...]                       # (N, D)
    W = w_ref[...]                       # (D, 6D)
    b = b_ref[...]                       # (8, D)
    mask = mask_ref[...]                 # (N, N)

    gamma, beta = b[6:7], b[7:8]

    # Fused Q/K/V projection: one MXU matmul over all B*S rows.
    qkv = jnp.dot(x, W[:, : 3 * DIM], preferred_element_type=f32)    # (N, 3D)
    q = qkv[:, 0 * DIM:1 * DIM] + b[0:1]     # scale already folded into Wq/bq
    k = qkv[:, 1 * DIM:2 * DIM] + b[1:2]
    v = qkv[:, 2 * DIM:3 * DIM] + b[2:3]

    wo = W[:, 3 * DIM:4 * DIM]           # (D, D)

    # Contract last dims (q_h @ k_h^T) without materializing k^T.
    nt_dims = (((1,), (1,)), ((), ()))

    n_rows = x.shape[0]
    attn = jnp.zeros((n_rows, DIM), f32)
    # Static 4-way unroll over heads; output projection folded in (no concat).
    for h in range(HEADS):
        sl = slice(h * HEAD_DIM, (h + 1) * HEAD_DIM)
        s = jax.lax.dot_general(q[:, sl], k[:, sl], nt_dims,
                                preferred_element_type=f32) + mask
        m = jnp.max(s, axis=-1, keepdims=True)
        p = jnp.exp(s - m)
        denom = jnp.sum(p, axis=-1, keepdims=True)
        p = p * pl.reciprocal(denom, approx=True)          # EUP, not VALU divide
        ctx = jnp.dot(p, v[:, sl], preferred_element_type=f32)        # (N, Hd)
        attn = attn + jnp.dot(ctx, wo[sl, :], preferred_element_type=f32)
    attn = attn + b[3:4]                                              # + bo

    def layer_norm(y):
        mu = jnp.mean(y, axis=-1, keepdims=True)
        var = jnp.mean((y - mu) * (y - mu), axis=-1, keepdims=True)
        return (y - mu) * jax.lax.rsqrt(var + LN_EPS) * gamma + beta

    h1 = layer_norm(attn + x)                                        # LN(MHA + x)

    ffn = jnp.dot(h1, W[:, 4 * DIM:5 * DIM], preferred_element_type=f32) + b[4:5]
    ffn = jnp.maximum(ffn, 0.0)
    ffn = jnp.dot(ffn, W[:, 5 * DIM:6 * DIM], preferred_element_type=f32) + b[5:6]

    o_ref[...] = layer_norm(ffn + h1)                                # LN(FFN + h1)


def make_params(key):
    ks = jax.random.split(key, 10)

    def init(k, shape, scale=0.1):
        return (scale * jax.random.normal(k, shape)).astype(jnp.float32)

    p = {}
    # nn.MultiheadAttention: in_proj (3D, D) split; out_proj (D, D).
    p["wq"] = init(ks[0], (DIM, DIM))
    p["wk"] = init(ks[1], (DIM, DIM))
    p["wv"] = init(ks[2], (DIM, DIM))
    p["bq"] = init(ks[3], (DIM,))
    p["bk"] = init(ks[4], (DIM,))
    p["bv"] = init(ks[5], (DIM,))
    p["wo"] = init(ks[6], (DIM, DIM))
    p["bo"] = init(ks[7], (DIM,))
    # FFN: Linear(D, D) -> ReLU -> Linear(D, D)  (matches the spec: no expansion).
    p["w1"] = init(ks[8], (DIM, DIM))
    p["b1"] = jnp.zeros((DIM,), jnp.float32)
    p["w2"] = init(ks[9], (DIM, DIM))
    p["b2"] = jnp.zeros((DIM,), jnp.float32)
    # Shared LayerNorm (the module reuses self.LN for both norms).
    p["gamma"] = jnp.ones((DIM,), jnp.float32)
    p["beta"] = jnp.zeros((DIM,), jnp.float32)
    return p


def _block_causal_mask_bias(batch, seq):
    """(B*S, B*S) additive bias: 0 where row attends col, -1e30 otherwise.

    Allowed iff same batch element AND key position <= query position.
    """
    n = batch * seq
    idx = np.arange(n)
    same_batch = (idx[:, None] // seq) == (idx[None, :] // seq)
    causal_ok = idx[None, :] <= idx[:, None]
    allowed = same_batch & causal_ok
    return np.where(allowed, 0.0, NEG_INF).astype(np.float32)


def encoder_forward(x, p):
    B, S, D = x.shape
    N = B * S
    scale = 1.0 / math.sqrt(HEAD_DIM)

    x2d = x.reshape(N, D).astype(jnp.float32)
    # Pre-transpose linear weights so the kernel does y = x @ W + b
    # (PyTorch Linear is y = x W^T + b); attention scale folded into Wq/bq.
    w_slab = jnp.concatenate(
        [p["wq"].T * scale, p["wk"].T, p["wv"].T, p["wo"].T, p["w1"].T, p["w2"].T],
        axis=1,
    ).astype(jnp.float32)                                            # (D, 6D)
    b_stack = jnp.stack(
        [p["bq"] * scale, p["bk"], p["bv"], p["bo"], p["b1"], p["b2"],
         p["gamma"], p["beta"]],
        axis=0,
    ).astype(jnp.float32)                                            # (8, D)
    mask = jnp.asarray(_block_causal_mask_bias(B, S))                # (N, N)

    out2d = pl.pallas_call(
        encoder_kernel,
        out_shape=jax.ShapeDtypeStruct((N, D), jnp.float32),
        grid_spec=pltpu.PrefetchScalarGridSpec(
            num_scalar_prefetch=0,
            grid=(1,),                                               # single step
            in_specs=[
                pl.BlockSpec((N, D), lambda i: (0, 0)),              # x (flattened)
                pl.BlockSpec((D, 6 * D), lambda i: (0, 0)),          # weight slab
                pl.BlockSpec((8, D), lambda i: (0, 0)),              # bias/LN stack
                pl.BlockSpec((N, N), lambda i: (0, 0)),              # mask bias
            ],
            out_specs=pl.BlockSpec((N, D), lambda i: (0, 0)),
        ),
        compiler_params=pltpu.CompilerParams(dimension_semantics=("arbitrary",)),
    )(x2d, w_slab, b_stack, mask)
    return out2d.reshape(B, S, D)


def encoder_reference(x, p):
    """Pure-JAX reference mirroring the PyTorch forward (eval mode)."""
    def linear(v, w, b):
        return v @ w.T + b

    q = linear(x, p["wq"], p["bq"]) / math.sqrt(HEAD_DIM)
    k = linear(x, p["wk"], p["bk"])
    v = linear(x, p["wv"], p["bv"])
    B, S, D = x.shape
    qh = q.reshape(B, S, HEADS, HEAD_DIM)
    kh = k.reshape(B, S, HEADS, HEAD_DIM)
    vh = v.reshape(B, S, HEADS, HEAD_DIM)
    s = jnp.einsum("bqhd,bkhd->bhqk", qh, kh)
    mask = np.triu(np.ones((S, S)), k=1).astype(bool)
    s = jnp.where(mask[None, None], -jnp.inf, s)
    a = jax.nn.softmax(s, axis=-1)
    o = jnp.einsum("bhqk,bkhd->bqhd", a, vh).reshape(B, S, D)
    o = linear(o, p["wo"], p["bo"])

    def ln(y):
        mu = y.mean(-1, keepdims=True)
        var = ((y - mu) ** 2).mean(-1, keepdims=True)
        return (y - mu) / jnp.sqrt(var + LN_EPS) * p["gamma"] + p["beta"]

    h1 = ln(o + x)
    f = linear(jax.nn.relu(linear(h1, p["w1"], p["b1"])), p["w2"], p["b2"])
    return ln(f + h1)


if __name__ == "__main__":
    key = jax.random.PRNGKey(0)
    kx, kp = jax.random.split(key)
    x = jax.random.normal(kx, (BATCH, WINDOW, DIM), dtype=jnp.float32)
    params = make_params(kp)

    out = encoder_forward(x, params)
    out = jax.block_until_ready(out)

    ref = encoder_reference(x, params)
    # Tolerance 2e-3: softmax uses the EUP approximate reciprocal in-kernel.
    np.testing.assert_allclose(np.asarray(out), np.asarray(ref), rtol=2e-3, atol=2e-3)
    print("KERNEL_OK")
</pallas_src>

<mosaic_0001>
module attributes {stable_mosaic.version = 11 : i64} {
  func.func @encoder_kernel(%arg0: i32, %arg1: memref<16x32xf32, #tpu.memory_space<vmem>>, %arg2: memref<32x192xf32, #tpu.memory_space<vmem>>, %arg3: memref<8x32xf32, #tpu.memory_space<vmem>>, %arg4: memref<16x16xf32, #tpu.memory_space<vmem>>, %arg5: memref<16x32xf32, #tpu.memory_space<vmem>>) attributes {dimension_semantics = [#tpu.dimension_semantics<arbitrary>], iteration_bounds = array<i64: 1>, scalar_prefetch = 0 : i64, scratch_operands = 0 : i64, tpu.core_type = #tpu.core_type<tc>, window_params = [{pipeline_mode = #tpu.pipeline_mode<synchronous>, transform_indices = @transform_0, window_bounds = array<i64: 16, 32>}, {pipeline_mode = #tpu.pipeline_mode<synchronous>, transform_indices = @transform_1, window_bounds = array<i64: 32, 192>}, {pipeline_mode = #tpu.pipeline_mode<synchronous>, transform_indices = @transform_2, window_bounds = array<i64: 8, 32>}, {pipeline_mode = #tpu.pipeline_mode<synchronous>, transform_indices = @transform_3, window_bounds = array<i64: 16, 16>}, {pipeline_mode = #tpu.pipeline_mode<synchronous>, transform_indices = @transform_4, window_bounds = array<i64: 16, 32>}]} {
    %c0 = arith.constant 0 : index
    %c0_0 = arith.constant 0 : index
    %0 = vector.load %arg1[%c0, %c0_0] : memref<16x32xf32, #tpu.memory_space<vmem>>, vector<16x32xf32>
    %c0_1 = arith.constant 0 : index
    %c0_2 = arith.constant 0 : index
    %1 = vector.load %arg2[%c0_1, %c0_2] : memref<32x192xf32, #tpu.memory_space<vmem>>, vector<32x192xf32>
    %c0_3 = arith.constant 0 : index
    %c0_4 = arith.constant 0 : index
    %2 = vector.load %arg3[%c0_3, %c0_4] : memref<8x32xf32, #tpu.memory_space<vmem>>, vector<8x32xf32>
    %c0_5 = arith.constant 0 : index
    %c0_6 = arith.constant 0 : index
    %3 = vector.load %arg4[%c0_5, %c0_6] : memref<16x16xf32, #tpu.memory_space<vmem>>, vector<16x16xf32>
    %4 = vector.extract_strided_slice %2 {offsets = [6, 0], sizes = [1, 32], strides = [1, 1]} : vector<8x32xf32> to vector<1x32xf32>
    %5 = vector.extract_strided_slice %2 {offsets = [7, 0], sizes = [1, 32], strides = [1, 1]} : vector<8x32xf32> to vector<1x32xf32>
    %6 = vector.extract_strided_slice %1 {offsets = [0, 0], sizes = [32, 96], strides = [1, 1]} : vector<32x192xf32> to vector<32x96xf32>
    %cst = arith.constant dense<0.000000e+00> : vector<16x96xf32>
    %7 = tpu.matmul %0, %6, %cst {dimension_numbers = #tpu.dot_dimension_numbers<[1], [0], [0], [1], [0, 0, 1, 1], [], []>} : vector<16x32xf32>, vector<32x96xf32>, vector<16x96xf32> -> vector<16x96xf32>
    %8 = vector.extract_strided_slice %7 {offsets = [0, 0], sizes = [16, 32], strides = [1, 1]} : vector<16x96xf32> to vector<16x32xf32>
    %9 = vector.extract_strided_slice %2 {offsets = [0, 0], sizes = [1, 32], strides = [1, 1]} : vector<8x32xf32> to vector<1x32xf32>
    %10 = vector.broadcast %9 : vector<1x32xf32> to vector<16x32xf32>
    %11 = arith.addf %8, %10 : vector<16x32xf32>
    %12 = vector.extract_strided_slice %7 {offsets = [0, 32], sizes = [16, 32], strides = [1, 1]} : vector<16x96xf32> to vector<16x32xf32>
    %13 = vector.extract_strided_slice %2 {offsets = [1, 0], sizes = [1, 32], strides = [1, 1]} : vector<8x32xf32> to vector<1x32xf32>
    %14 = vector.broadcast %13 : vector<1x32xf32> to vector<16x32xf32>
    %15 = arith.addf %12, %14 : vector<16x32xf32>
    %16 = vector.extract_strided_slice %7 {offsets = [0, 64], sizes = [16, 32], strides = [1, 1]} : vector<16x96xf32> to vector<16x32xf32>
    %17 = vector.extract_strided_slice %2 {offsets = [2, 0], sizes = [1, 32], strides = [1, 1]} : vector<8x32xf32> to vector<1x32xf32>
    %18 = vector.broadcast %17 : vector<1x32xf32> to vector<16x32xf32>
    %19 = arith.addf %16, %18 : vector<16x32xf32>
    %20 = vector.extract_strided_slice %1 {offsets = [0, 96], sizes = [32, 32], strides = [1, 1]} : vector<32x192xf32> to vector<32x32xf32>
    %cst_7 = arith.constant 0.000000e+00 : f32
    %21 = vector.broadcast %cst_7 : f32 to vector<16x32xf32>
    %22 = vector.extract_strided_slice %11 {offsets = [0, 0], sizes = [16, 8], strides = [1, 1]} : vector<16x32xf32> to vector<16x8xf32>
    %23 = vector.extract_strided_slice %15 {offsets = [0, 0], sizes = [16, 8], strides = [1, 1]} : vector<16x32xf32> to vector<16x8xf32>
    %cst_8 = arith.constant dense<0.000000e+00> : vector<16x16xf32>
    %24 = tpu.matmul %22, %23, %cst_8 {dimension_numbers = #tpu.dot_dimension_numbers<[1], [1], [0], [0], [0, 0, 1, 0], [], []>} : vector<16x8xf32>, vector<16x8xf32>, vector<16x16xf32> -> vector<16x16xf32>
    %25 = arith.addf %24, %3 : vector<16x16xf32>
    %cst_9 = arith.constant dense<0xFF800000> : vector<16xf32>
    %26 = vector.multi_reduction <maximumf>, %25, %cst_9 [1] : vector<16x16xf32> to vector<16xf32>
    %27 = vector.shape_cast %26 : vector<16xf32> to vector<16x1xf32>
    %28 = vector.broadcast %27 : vector<16x1xf32> to vector<16x16xf32>
    %29 = arith.subf %25, %28 : vector<16x16xf32>
    %30 = math.exp %29 : vector<16x16xf32>
    %cst_10 = arith.constant dense<0.000000e+00> : vector<16xf32>
    %31 = vector.multi_reduction <add>, %30, %cst_10 [1] : vector<16x16xf32> to vector<16xf32>
    %32 = vector.shape_cast %31 : vector<16xf32> to vector<16x1xf32>
    %33 = tpu.reciprocal %32 {approx = true} : vector<16x1xf32> -> vector<16x1xf32>
    %34 = vector.broadcast %33 : vector<16x1xf32> to vector<16x16xf32>
    %35 = arith.mulf %30, %34 : vector<16x16xf32>
    %36 = vector.extract_strided_slice %19 {offsets = [0, 0], sizes = [16, 8], strides = [1, 1]} : vector<16x32xf32> to vector<16x8xf32>
    %cst_11 = arith.constant dense<0.000000e+00> : vector<16x8xf32>
    %37 = tpu.matmul %35, %36, %cst_11 {dimension_numbers = #tpu.dot_dimension_numbers<[1], [0], [0], [1], [0, 0, 1, 1], [], []>} : vector<16x16xf32>, vector<16x8xf32>, vector<16x8xf32> -> vector<16x8xf32>
    %38 = vector.extract_strided_slice %20 {offsets = [0, 0], sizes = [8, 32], strides = [1, 1]} : vector<32x32xf32> to vector<8x32xf32>
    %cst_12 = arith.constant dense<0.000000e+00> : vector<16x32xf32>
    %39 = tpu.matmul %37, %38, %cst_12 {dimension_numbers = #tpu.dot_dimension_numbers<[1], [0], [0], [1], [0, 0, 1, 1], [], []>} : vector<16x8xf32>, vector<8x32xf32>, vector<16x32xf32> -> vector<16x32xf32>
    %40 = arith.addf %21, %39 : vector<16x32xf32>
    %41 = vector.extract_strided_slice %11 {offsets = [0, 8], sizes = [16, 8], strides = [1, 1]} : vector<16x32xf32> to vector<16x8xf32>
    %42 = vector.extract_strided_slice %15 {offsets = [0, 8], sizes = [16, 8], strides = [1, 1]} : vector<16x32xf32> to vector<16x8xf32>
    %cst_13 = arith.constant dense<0.000000e+00> : vector<16x16xf32>
    %43 = tpu.matmul %41, %42, %cst_13 {dimension_numbers = #tpu.dot_dimension_numbers<[1], [1], [0], [0], [0, 0, 1, 0], [], []>} : vector<16x8xf32>, vector<16x8xf32>, vector<16x16xf32> -> vector<16x16xf32>
    %44 = arith.addf %43, %3 : vector<16x16xf32>
    %cst_14 = arith.constant dense<0xFF800000> : vector<16xf32>
    %45 = vector.multi_reduction <maximumf>, %44, %cst_14 [1] : vector<16x16xf32> to vector<16xf32>
    %46 = vector.shape_cast %45 : vector<16xf32> to vector<16x1xf32>
    %47 = vector.broadcast %46 : vector<16x1xf32> to vector<16x16xf32>
    %48 = arith.subf %44, %47 : vector<16x16xf32>
    %49 = math.exp %48 : vector<16x16xf32>
    %cst_15 = arith.constant dense<0.000000e+00> : vector<16xf32>
    %50 = vector.multi_reduction <add>, %49, %cst_15 [1] : vector<16x16xf32> to vector<16xf32>
    %51 = vector.shape_cast %50 : vector<16xf32> to vector<16x1xf32>
    %52 = tpu.reciprocal %51 {approx = true} : vector<16x1xf32> -> vector<16x1xf32>
    %53 = vector.broadcast %52 : vector<16x1xf32> to vector<16x16xf32>
    %54 = arith.mulf %49, %53 : vector<16x16xf32>
    %55 = vector.extract_strided_slice %19 {offsets = [0, 8], sizes = [16, 8], strides = [1, 1]} : vector<16x32xf32> to vector<16x8xf32>
    %cst_16 = arith.constant dense<0.000000e+00> : vector<16x8xf32>
    %56 = tpu.matmul %54, %55, %cst_16 {dimension_numbers = #tpu.dot_dimension_numbers<[1], [0], [0], [1], [0, 0, 1, 1], [], []>} : vector<16x16xf32>, vector<16x8xf32>, vector<16x8xf32> -> vector<16x8xf32>
    %57 = vector.extract_strided_slice %20 {offsets = [8, 0], sizes = [8, 32], strides = [1, 1]} : vector<32x32xf32> to vector<8x32xf32>
    %cst_17 = arith.constant dense<0.000000e+00> : vector<16x32xf32>
    %58 = tpu.matmul %56, %57, %cst_17 {dimension_numbers = #tpu.dot_dimension_numbers<[1], [0], [0], [1], [0, 0, 1, 1], [], []>} : vector<16x8xf32>, vector<8x32xf32>, vector<16x32xf32> -> vector<16x32xf32>
    %59 = arith.addf %40, %58 : vector<16x32xf32>
    %60 = vector.extract_strided_slice %11 {offsets = [0, 16], sizes = [16, 8], strides = [1, 1]} : vector<16x32xf32> to vector<16x8xf32>
    %61 = vector.extract_strided_slice %15 {offsets = [0, 16], sizes = [16, 8], strides = [1, 1]} : vector<16x32xf32> to vector<16x8xf32>
    %cst_18 = arith.constant dense<0.000000e+00> : vector<16x16xf32>
    %62 = tpu.matmul %60, %61, %cst_18 {dimension_numbers = #tpu.dot_dimension_numbers<[1], [1], [0], [0], [0, 0, 1, 0], [], []>} : vector<16x8xf32>, vector<16x8xf32>, vector<16x16xf32> -> vector<16x16xf32>
    %63 = arith.addf %62, %3 : vector<16x16xf32>
    %cst_19 = arith.constant dense<0xFF800000> : vector<16xf32>
    %64 = vector.multi_reduction <maximumf>, %63, %cst_19 [1] : vector<16x16xf32> to vector<16xf32>
    %65 = vector.shape_cast %64 : vector<16xf32> to vector<16x1xf32>
    %66 = vector.broadcast %65 : vector<16x1xf32> to vector<16x16xf32>
    %67 = arith.subf %63, %66 : vector<16x16xf32>
    %68 = math.exp %67 : vector<16x16xf32>
    %cst_20 = arith.constant dense<0.000000e+00> : vector<16xf32>
    %69 = vector.multi_reduction <add>, %68, %cst_20 [1] : vector<16x16xf32> to vector<16xf32>
    %70 = vector.shape_cast %69 : vector<16xf32> to vector<16x1xf32>
    %71 = tpu.reciprocal %70 {approx = true} : vector<16x1xf32> -> vector<16x1xf32>
    %72 = vector.broadcast %71 : vector<16x1xf32> to vector<16x16xf32>
    %73 = arith.mulf %68, %72 : vector<16x16xf32>
    %74 = vector.extract_strided_slice %19 {offsets = [0, 16], sizes = [16, 8], strides = [1, 1]} : vector<16x32xf32> to vector<16x8xf32>
    %cst_21 = arith.constant dense<0.000000e+00> : vector<16x8xf32>
    %75 = tpu.matmul %73, %74, %cst_21 {dimension_numbers = #tpu.dot_dimension_numbers<[1], [0], [0], [1], [0, 0, 1, 1], [], []>} : vector<16x16xf32>, vector<16x8xf32>, vector<16x8xf32> -> vector<16x8xf32>
    %76 = vector.extract_strided_slice %20 {offsets = [16, 0], sizes = [8, 32], strides = [1, 1]} : vector<32x32xf32> to vector<8x32xf32>
    %cst_22 = arith.constant dense<0.000000e+00> : vector<16x32xf32>
    %77 = tpu.matmul %75, %76, %cst_22 {dimension_numbers = #tpu.dot_dimension_numbers<[1], [0], [0], [1], [0, 0, 1, 1], [], []>} : vector<16x8xf32>, vector<8x32xf32>, vector<16x32xf32> -> vector<16x32xf32>
    %78 = arith.addf %59, %77 : vector<16x32xf32>
    %79 = vector.extract_strided_slice %11 {offsets = [0, 24], sizes = [16, 8], strides = [1, 1]} : vector<16x32xf32> to vector<16x8xf32>
    %80 = vector.extract_strided_slice %15 {offsets = [0, 24], sizes = [16, 8], strides = [1, 1]} : vector<16x32xf32> to vector<16x8xf32>
    %cst_23 = arith.constant dense<0.000000e+00> : vector<16x16xf32>
    %81 = tpu.matmul %79, %80, %cst_23 {dimension_numbers = #tpu.dot_dimension_numbers<[1], [1], [0], [0], [0, 0, 1, 0], [], []>} : vector<16x8xf32>, vector<16x8xf32>, vector<16x16xf32> -> vector<16x16xf32>
    %82 = arith.addf %81, %3 : vector<16x16xf32>
    %cst_24 = arith.constant dense<0xFF800000> : vector<16xf32>
    %83 = vector.multi_reduction <maximumf>, %82, %cst_24 [1] : vector<16x16xf32> to vector<16xf32>
    %84 = vector.shape_cast %83 : vector<16xf32> to vector<16x1xf32>
    %85 = vector.broadcast %84 : vector<16x1xf32> to vector<16x16xf32>
    %86 = arith.subf %82, %85 : vector<16x16xf32>
    %87 = math.exp %86 : vector<16x16xf32>
    %cst_25 = arith.constant dense<0.000000e+00> : vector<16xf32>
    %88 = vector.multi_reduction <add>, %87, %cst_25 [1] : vector<16x16xf32> to vector<16xf32>
    %89 = vector.shape_cast %88 : vector<16xf32> to vector<16x1xf32>
    %90 = tpu.reciprocal %89 {approx = true} : vector<16x1xf32> -> vector<16x1xf32>
    %91 = vector.broadcast %90 : vector<16x1xf32> to vector<16x16xf32>
    %92 = arith.mulf %87, %91 : vector<16x16xf32>
    %93 = vector.extract_strided_slice %19 {offsets = [0, 24], sizes = [16, 8], strides = [1, 1]} : vector<16x32xf32> to vector<16x8xf32>
    %cst_26 = arith.constant dense<0.000000e+00> : vector<16x8xf32>
    %94 = tpu.matmul %92, %93, %cst_26 {dimension_numbers = #tpu.dot_dimension_numbers<[1], [0], [0], [1], [0, 0, 1, 1], [], []>} : vector<16x16xf32>, vector<16x8xf32>, vector<16x8xf32> -> vector<16x8xf32>
    %95 = vector.extract_strided_slice %20 {offsets = [24, 0], sizes = [8, 32], strides = [1, 1]} : vector<32x32xf32> to vector<8x32xf32>
    %cst_27 = arith.constant dense<0.000000e+00> : vector<16x32xf32>
    %96 = tpu.matmul %94, %95, %cst_27 {dimension_numbers = #tpu.dot_dimension_numbers<[1], [0], [0], [1], [0, 0, 1, 1], [], []>} : vector<16x8xf32>, vector<8x32xf32>, vector<16x32xf32> -> vector<16x32xf32>
    %97 = arith.addf %78, %96 : vector<16x32xf32>
    %98 = vector.extract_strided_slice %2 {offsets = [3, 0], sizes = [1, 32], strides = [1, 1]} : vector<8x32xf32> to vector<1x32xf32>
    %99 = vector.broadcast %98 : vector<1x32xf32> to vector<16x32xf32>
    %100 = arith.addf %97, %99 : vector<16x32xf32>
    %101 = arith.addf %100, %0 : vector<16x32xf32>
    %cst_28 = arith.constant dense<0.000000e+00> : vector<16xf32>
    %102 = vector.multi_reduction <add>, %101, %cst_28 [1] : vector<16x32xf32> to vector<16xf32>
    %103 = vector.shape_cast %102 : vector<16xf32> to vector<16x1xf32>
    %cst_29 = arith.constant 3.200000e+01 : f32
    %104 = vector.broadcast %cst_29 : f32 to vector<16x1xf32>
    %105 = arith.divf %103, %104 : vector<16x1xf32>
    %106 = vector.broadcast %105 : vector<16x1xf32> to vector<16x32xf32>
    %107 = arith.subf %101, %106 : vector<16x32xf32>
    %108 = vector.broadcast %105 : vector<16x1xf32> to vector<16x32xf32>
    %109 = arith.subf %101, %108 : vector<16x32xf32>
    %110 = arith.mulf %107, %109 : vector<16x32xf32>
    %cst_30 = arith.constant dense<0.000000e+00> : vector<16xf32>
    %111 = vector.multi_reduction <add>, %110, %cst_30 [1] : vector<16x32xf32> to vector<16xf32>
    %112 = vector.shape_cast %111 : vector<16xf32> to vector<16x1xf32>
    %cst_31 = arith.constant 3.200000e+01 : f32
    %113 = vector.broadcast %cst_31 : f32 to vector<16x1xf32>
    %114 = arith.divf %112, %113 : vector<16x1xf32>
    %115 = vector.broadcast %105 : vector<16x1xf32> to vector<16x32xf32>
    %116 = arith.subf %101, %115 : vector<16x32xf32>
    %cst_32 = arith.constant 9.99999974E-6 : f32
    %117 = vector.broadcast %cst_32 : f32 to vector<16x1xf32>
    %118 = arith.addf %114, %117 : vector<16x1xf32>
    %119 = math.rsqrt %118 : vector<16x1xf32>
    %120 = vector.broadcast %119 : vector<16x1xf32> to vector<16x32xf32>
    %121 = arith.mulf %116, %120 : vector<16x32xf32>
    %122 = vector.broadcast %4 : vector<1x32xf32> to vector<16x32xf32>
    %123 = arith.mulf %121, %122 : vector<16x32xf32>
    %124 = vector.broadcast %5 : vector<1x32xf32> to vector<16x32xf32>
    %125 = arith.addf %123, %124 : vector<16x32xf32>
    %126 = vector.extract_strided_slice %1 {offsets = [0, 128], sizes = [32, 32], strides = [1, 1]} : vector<32x192xf32> to vector<32x32xf32>
    %cst_33 = arith.constant dense<0.000000e+00> : vector<16x32xf32>
    %127 = tpu.matmul %125, %126, %cst_33 {dimension_numbers = #tpu.dot_dimension_numbers<[1], [0], [0], [1], [0, 0, 1, 1], [], []>} : vector<16x32xf32>, vector<32x32xf32>, vector<16x32xf32> -> vector<16x32xf32>
    %128 = vector.extract_strided_slice %2 {offsets = [4, 0], sizes = [1, 32], strides = [1, 1]} : vector<8x32xf32> to vector<1x32xf32>
    %129 = vector.broadcast %128 : vector<1x32xf32> to vector<16x32xf32>
    %130 = arith.addf %127, %129 : vector<16x32xf32>
    %cst_34 = arith.constant 0.000000e+00 : f32
    %131 = vector.broadcast %cst_34 : f32 to vector<16x32xf32>
    %132 = arith.maximumf %130, %131 : vector<16x32xf32>
    %133 = vector.extract_strided_slice %1 {offsets = [0, 160], sizes = [32, 32], strides = [1, 1]} : vector<32x192xf32> to vector<32x32xf32>
    %cst_35 = arith.constant dense<0.000000e+00> : vector<16x32xf32>
    %134 = tpu.matmul %132, %133, %cst_35 {dimension_numbers = #tpu.dot_dimension_numbers<[1], [0], [0], [1], [0, 0, 1, 1], [], []>} : vector<16x32xf32>, vector<32x32xf32>, vector<16x32xf32> -> vector<16x32xf32>
    %135 = vector.extract_strided_slice %2 {offsets = [5, 0], sizes = [1, 32], strides = [1, 1]} : vector<8x32xf32> to vector<1x32xf32>
    %136 = vector.broadcast %135 : vector<1x32xf32> to vector<16x32xf32>
    %137 = arith.addf %134, %136 : vector<16x32xf32>
    %138 = arith.addf %137, %125 : vector<16x32xf32>
    %cst_36 = arith.constant dense<0.000000e+00> : vector<16xf32>
    %139 = vector.multi_reduction <add>, %138, %cst_36 [1] : vector<16x32xf32> to vector<16xf32>
    %140 = vector.shape_cast %139 : vector<16xf32> to vector<16x1xf32>
    %cst_37 = arith.constant 3.200000e+01 : f32
    %141 = vector.broadcast %cst_37 : f32 to vector<16x1xf32>
    %142 = arith.divf %140, %141 : vector<16x1xf32>
    %143 = vector.broadcast %142 : vector<16x1xf32> to vector<16x32xf32>
    %144 = arith.subf %138, %143 : vector<16x32xf32>
    %145 = vector.broadcast %142 : vector<16x1xf32> to vector<16x32xf32>
    %146 = arith.subf %138, %145 : vector<16x32xf32>
    %147 = arith.mulf %144, %146 : vector<16x32xf32>
    %cst_38 = arith.constant dense<0.000000e+00> : vector<16xf32>
    %148 = vector.multi_reduction <add>, %147, %cst_38 [1] : vector<16x32xf32> to vector<16xf32>
    %149 = vector.shape_cast %148 : vector<16xf32> to vector<16x1xf32>
    %cst_39 = arith.constant 3.200000e+01 : f32
    %150 = vector.broadcast %cst_39 : f32 to vector<16x1xf32>
    %151 = arith.divf %149, %150 : vector<16x1xf32>
    %152 = vector.broadcast %142 : vector<16x1xf32> to vector<16x32xf32>
    %153 = arith.subf %138, %152 : vector<16x32xf32>
    %cst_40 = arith.constant 9.99999974E-6 : f32
    %154 = vector.broadcast %cst_40 : f32 to vector<16x1xf32>
    %155 = arith.addf %151, %154 : vector<16x1xf32>
    %156 = math.rsqrt %155 : vector<16x1xf32>
    %157 = vector.broadcast %156 : vector<16x1xf32> to vector<16x32xf32>
    %158 = arith.mulf %153, %157 : vector<16x32xf32>
    %159 = vector.broadcast %4 : vector<1x32xf32> to vector<16x32xf32>
    %160 = arith.mulf %158, %159 : vector<16x32xf32>
    %161 = vector.broadcast %5 : vector<1x32xf32> to vector<16x32xf32>
    %162 = arith.addf %160, %161 : vector<16x32xf32>
    %c0_41 = arith.constant 0 : index
    %c0_42 = arith.constant 0 : index
    %163 = vector.load %arg5[%c0_41, %c0_42] : memref<16x32xf32, #tpu.memory_space<vmem>>, vector<16x32xf32>
    tpu.vector_store %arg5[%c0_41, %c0_42], %162 {strides = array<i32>} : memref<16x32xf32, #tpu.memory_space<vmem>>, vector<16x32xf32>,
    return
  }
  func.func @transform_0(%arg0: i32) -> (i32, i32) {
    %c0_i32 = arith.constant 0 : i32
    %c0_i32_0 = arith.constant 0 : i32
    %c0_i32_1 = arith.constant 0 : i32
    return %c0_i32, %c0_i32_0 : i32, i32
  }
  func.func @transform_1(%arg0: i32) -> (i32, i32) {
    %c0_i32 = arith.constant 0 : i32
    %c0_i32_0 = arith.constant 0 : i32
    %c0_i32_1 = arith.constant 0 : i32
    return %c0_i32, %c0_i32_0 : i32, i32
  }
  func.func @transform_2(%arg0: i32) -> (i32, i32) {
    %c0_i32 = arith.constant 0 : i32
    %c0_i32_0 = arith.constant 0 : i32
    %c0_i32_1 = arith.constant 0 : i32
    return %c0_i32, %c0_i32_0 : i32, i32
  }
  func.func @transform_3(%arg0: i32) -> (i32, i32) {
    %c0_i32 = arith.constant 0 : i32
    %c0_i32_0 = arith.constant 0 : i32
    %c0_i32_1 = arith.constant 0 : i32
    return %c0_i32, %c0_i32_0 : i32, i32
  }
  func.func @transform_4(%arg0: i32) -> (i32, i32) {
    %c0_i32 = arith.constant 0 : i32
    %c0_i32_0 = arith.constant 0 : i32
    %c0_i32_1 = arith.constant 0 : i32
    return %c0_i32, %c0_i32_0 : i32, i32
  }
}

</mosaic_0001>

<llo_original>
// kernel: tpu_custom_call.1
$region0: #{tpu_custom_call.1}
  #allocation0 [shape = 'u32[]', space=smem, size = 0x4, offset = 0x4, fixed_abs, tag = 'smem constant byte address 0x4 - core index']
  #allocation1 [shape = 'u32[144,128]{1,0:T(1,128)}', space=vmem, size = 0x12000, scoped, tag = 'internal scratch']
  %s0 = inlined_call_operand.hbm [shape: f32[16,32], index: 0, kind: input, shape index: {}]
  %s1 = inlined_call_operand.hbm [shape: f32[32,192], index: 1, kind: input, shape index: {}]
  %s2 = inlined_call_operand.hbm [shape: f32[8,32], index: 2, kind: input, shape index: {}]
  %s3 = inlined_call_operand.hbm [shape: f32[16,16], index: 3, kind: input, shape index: {}]
  %s4 = inlined_call_operand.hbm [shape: f32[16,32], index: 4, kind: output, shape index: {}]
  %s5 = sld [smem:[#allocation0]]
  $region42: #{tpu_custom_call.1} parent=0
    _
  %s7 = ssub.s32 1, %s5
  %s8 = scalar_select 0, %s7, %s5
  $region1: #{tpu_custom_call.1} parent=0
    #allocation2 [shape = 'u8[8192]{0}', space=vmem, size = 0x2000, scoped, tag = 'input window, operand 0, single buffered']
    #allocation3 [shape = 's32[1]{0}', space=sflag, size = 0x4, scoped, tag = 'scoped memory for tpu_custom_call.1']
    #allocation4 [shape = 's32[1]{0}', space=sflag, size = 0x4, scoped, tag = 'scoped memory for tpu_custom_call.1']
    #allocation5 [shape = 'u8[32768]{0}', space=vmem, size = 0x8000, scoped, tag = 'input window, operand 1, single buffered']
    #allocation6 [shape = 's32[1]{0}', space=sflag, size = 0x4, scoped, tag = 'scoped memory for tpu_custom_call.1']
    #allocation7 [shape = 'u8[4096]{0}', space=vmem, size = 0x1000, scoped, tag = 'input window, operand 2, single buffered']
    #allocation8 [shape = 'u8[8192]{0}', space=vmem, size = 0x2000, scoped, tag = 'input window, operand 3, single buffered']
    #allocation9 [shape = 's32[1]{0}', space=sflag, size = 0x4, scoped, tag = 'scoped memory for tpu_custom_call.1']
    #allocation10 [shape = 'u8[8192]{0}', space=vmem, size = 0x2000, scoped, tag = 'output window, operand 0, single buffered']
    %9 = vsyncpa [#allocation3], 0
    %10 = vsyncpa [#allocation6], 0
    %11 = vsyncpa [#allocation9], 0
    %12 = vsyncpa [#allocation4], 0
    // Predicated region
    $region2: #{tpu_custom_call.1} parent=1 // pred_check
      _
    $region3: #{tpu_custom_call.1} parent=1 // pred_check_branch
      %14 = sbr.rel (0) target = $region5
    $region4: #{tpu_custom_call.1} parent=1 // pred_region
      %s16 = ssub.s32 256, 256
      %17 = vsyncadd [#allocation3], %s16
      %s18 = sshll.u32 [#allocation2], 4
      %s19 = int_to_ptr.vmem [resolvable:$true] %s18
      %24 = dma.hbm_to_vmem [thread:$0]  %s0, 256, %s19, [#allocation3], 128, 128, 8
    $region5: #{tpu_custom_call.1} parent=1 // pred_fallthru
      _
    // Predicated region
    $region6: #{tpu_custom_call.1} parent=1 // pred_check
      _
    $region7: #{tpu_custom_call.1} parent=1 // pred_check_branch
      %26 = sbr.rel (0) target = $region9
    $region8: #{tpu_custom_call.1} parent=1 // pred_region
      %s28 = ssub.s32 1024, 1024
      %29 = vsyncadd [#allocation6], %s28
      %s30 = sshll.u32 [#allocation5], 4
      %s31 = int_to_ptr.vmem [resolvable:$true] %s30
      %36 = dma.hbm_to_vmem [thread:$0]  %s1, 1024, %s31, [#allocation6], 256, 256, 16
    $region9: #{tpu_custom_call.1} parent=1 // pred_fallthru
      _
    // Predicated region
    $region10: #{tpu_custom_call.1} parent=1 // pred_check
      _
    $region11: #{tpu_custom_call.1} parent=1 // pred_check_branch
      %38 = sbr.rel (0) target = $region13
    $region12: #{tpu_custom_call.1} parent=1 // pred_region
      %s40 = ssub.s32 128, 128
      %41 = vsyncadd [#allocation6], %s40
      %s43 = sshll.u32 [#allocation7], 4
      %s44 = int_to_ptr.vmem [resolvable:$true] %s43
      %46 = dma.hbm_to_vmem [thread:$0]  %s2, 128, %s44, [#allocation6]
    $region13: #{tpu_custom_call.1} parent=1 // pred_fallthru
      _
    // Predicated region
    $region14: #{tpu_custom_call.1} parent=1 // pred_check
      _
    $region15: #{tpu_custom_call.1} parent=1 // pred_check_branch
      %48 = sbr.rel (0) target = $region17
    $region16: #{tpu_custom_call.1} parent=1 // pred_region
      %s50 = ssub.s32 256, 256
      %51 = vsyncadd [#allocation9], %s50
      %s52 = sshll.u32 [#allocation8], 4
      %s53 = int_to_ptr.vmem [resolvable:$true] %s52
      %58 = dma.hbm_to_vmem [thread:$0]  %s3, 256, %s53, [#allocation9], 128, 128, 8
    $region17: #{tpu_custom_call.1} parent=1 // pred_fallthru
      _
    // Predicated region
    $region18: #{tpu_custom_call.1} parent=1 // pred_check
      _
    $region19: #{tpu_custom_call.1} parent=1 // pred_check_branch
      %60 = sbr.rel (0) target = $region21
    $region20: #{tpu_custom_call.1} parent=1 // pred_region
      %61 = dma.done [#allocation3], 256
    $region21: #{tpu_custom_call.1} parent=1 // pred_fallthru
      _
    // Predicated region
    $region22: #{tpu_custom_call.1} parent=1 // pred_check
      _
    $region23: #{tpu_custom_call.1} parent=1 // pred_check_branch
      %63 = sbr.rel (0) target = $region25
    $region24: #{tpu_custom_call.1} parent=1 // pred_region
      %64 = dma.done [#allocation6], 1024
    $region25: #{tpu_custom_call.1} parent=1 // pred_fallthru
      _
    // Predicated region
    $region26: #{tpu_custom_call.1} parent=1 // pred_check
      _
    $region27: #{tpu_custom_call.1} parent=1 // pred_check_branch
      %66 = sbr.rel (0) target = $region29
    $region28: #{tpu_custom_call.1} parent=1 // pred_region
      %67 = dma.done [#allocation6], 128
    $region29: #{tpu_custom_call.1} parent=1 // pred_fallthru
      _
    // Predicated region
    $region30: #{tpu_custom_call.1} parent=1 // pred_check
      _
    $region31: #{tpu_custom_call.1} parent=1 // pred_check_branch
      %69 = sbr.rel (0) target = $region33
    $region32: #{tpu_custom_call.1} parent=1 // pred_region
      %70 = dma.done [#allocation9], 256
    $region33: #{tpu_custom_call.1} parent=1 // pred_fallthru
      _
    %v71 = vld [vmem:[#allocation2] sm:$0xff]
    %v72 = vld [vmem:[#allocation2 + $0x8] sm:$0xff]
    %v73 = vld [vmem:[#allocation5] sm:$0xff]
    %v74 = vld [vmem:[#allocation5 + $0x8] sm:$0xff]
    %v75 = vld [vmem:[#allocation5 + $0x10] sm:$0xff]
    %v76 = vld [vmem:[#allocation5 + $0x18] sm:$0xff]
    %v77 = vld [vmem:[#allocation5 + $0x20] sm:$0xff]
    %v78 = vld [vmem:[#allocation5 + $0x28] sm:$0xff]
    %v79 = vld [vmem:[#allocation5 + $0x30] sm:$0xff]
    %v80 = vld [vmem:[#allocation5 + $0x38] sm:$0xff]
    %v81 = vld [vmem:[#allocation7] sm:$0xff]
    %v82 = vld [vmem:[#allocation8] sm:$0xff]
    %v83 = vld [vmem:[#allocation8 + $0x8] sm:$0xff]
    %vm84 = vcmask 261120
    %v86 = vsel %vm84, %v71, 0
    %v89 = vsel %vm84, %v72, 0
    %91 = vmatprep.subr.mxu0 0.0
    %92 = vmatpush1.msra.mxu0 %v73
    %93 = vmatprep.subr.mxu0 0.0
    %94 = vmatpush1.msra.mxu0 %v75
    %95 = vmatprep.subr.mxu0 0.0
    %96 = vmatpush1.msra.mxu0 %v77
    %97 = vmatprep.subr.mxu0 0.0
    %98 = vmatpush1.msra.mxu0 %v79
    %99 = vmatprep.subr.mxu0 0.0
    %100 = vmatpush1.msra.mxu0 0.0
    %101 = vmatprep.subr.mxu0 0.0
    %102 = vmatpush1.msra.mxu0 0.0
    %103 = vmatprep.subr.mxu0 0.0
    %104 = vmatpush1.msra.mxu0 0.0
    %105 = vmatprep.subr.mxu0 0.0
    %106 = vmatpush1.msra.mxu0 0.0
    %107 = vmatprep.subr.mxu0 0.0
    %108 = vmatpush1.msra.mxu0 0.0
    %109 = vmatprep.subr.mxu0 0.0
    %110 = vmatpush1.msra.mxu0 0.0
    %111 = vmatprep.subr.mxu0 0.0
    %112 = vmatpush1.msra.mxu0 0.0
    %113 = vmatprep.subr.mxu0 0.0
    %114 = vmatpush1.msra.mxu0 0.0
    %115 = vmatprep.subr.mxu0 0.0
    %116 = vmatpush1.msra.mxu0 0.0
    %117 = vmatprep.subr.mxu0 0.0
    %118 = vmatpush1.msra.mxu0 0.0
    %119 = vmatprep.subr.mxu0 0.0
    %120 = vmatpush1.msra.mxu0 0.0
    %121 = vmatprep.subr.mxu0 0.0
    %122 = vmatpush1.msra.mxu0 0.0
    %123 = vmatprep.subr.mxu0 0.0
    %124 = vmatpush1.msra.mxu0 0.0
    %125 = vmatprep.subr.mxu0 0.0
    %126 = vmatpush1.msra.mxu0 0.0
    %127 = vmatprep.subr.mxu0 0.0
    %128 = vmatpush1.msra.mxu0 0.0
    %129 = vmatprep.subr.mxu0 0.0
    %130 = vmatpush1.msra.mxu0 0.0
    %131 = vmatprep.subr.mxu0 0.0
    %132 = vmatpush1.msra.mxu0 0.0
    %133 = vmatprep.subr.mxu0 0.0
    %134 = vmatpush1.msra.mxu0 0.0
    %135 = vmatprep.subr.mxu0 0.0
    %136 = vmatpush1.msra.mxu0 0.0
    %137 = vmatprep.subr.mxu0 0.0
    %138 = vmatpush1.msra.mxu0 0.0
    %139 = vmatprep.subr.mxu0 0.0
    %140 = vmatpush1.msra.mxu0 0.0
    %141 = vmatprep.subr.mxu0 0.0
    %142 = vmatpush1.msra.mxu0 0.0
    %143 = vmatprep.subr.mxu0 0.0
    %144 = vmatpush1.msra.mxu0 0.0
    %145 = vmatprep.subr.mxu0 0.0
    %146 = vmatpush1.msra.mxu0 0.0
    %147 = vmatprep.subr.mxu0 0.0
    %148 = vmatpush1.msra.mxu0 0.0
    %149 = vmatprep.subr.mxu0 0.0
    %150 = vmatpush1.msra.mxu0 0.0
    %151 = vmatprep.subr.mxu0 0.0
    %152 = vmatpush1.msra.mxu0 0.0
    %153 = vmatprep.subr.mxu0 0.0
    %154 = vmatpush1.msra.mxu0 0.0
    %155 = vmatprep.mubr.f32.mxu0 0.0
    %156 = vmatmul.mubr.f32.gmra.mrb[0].mxu0 %v86
    %v157 = vpop.f32.mrb[0].mxu0
    %v158 = vadd.f32 0.0, %v157
    %v159 = vpop.f32.mrb[0].mxu0
    %160 = vmatprep.mubr.f32.mxu0 0.0
    %161 = vmatmul.mubr.f32.gmra.mrb[0].mxu0 %v89
    %v162 = vpop.f32.mrb[0].mxu0
    %v163 = vadd.f32 0.0, %v162
    %v164 = vpop.f32.mrb[0].mxu0
    %165 = vdwg.mxu0
    %v166 = vlaneseq
    %v167 = vshrl.u32 %v166, 7
    %v168 = vsub.s32 0, %v167
    %v169 = vrot.slane %v81, %v168
    %v170 = vadd.f32 %v158, %v169
    %v171 = vadd.f32 %v163, %v169
    %v172 = vlaneseq
    %v173 = vshrl.u32 %v172, 7
    %v174 = vsub.s32 1, %v173
    %v175 = vrot.slane %v81, %v174
    %177 = vrot.lane.b32.xlu0 %v175, 32
    %v178 = vpop.permute.xlu0 %177
    %v180 = vadd.f32 %v158, %v178
    %v181 = vadd.f32 %v163, %v178
    %v182 = vlaneseq
    %v183 = vshrl.u32 %v182, 7
    %v184 = vsub.s32 2, %v183
    %v185 = vrot.slane %v81, %v184
    %187 = vrot.lane.b32.xlu0 %v185, 64
    %v188 = vpop.permute.xlu0 %187
    %v190 = vadd.f32 %v158, %v188
    %v191 = vadd.f32 %v163, %v188
    %194 = vrot.lane.b32.xlu0 %v180, 96
    %v195 = vpop.permute.xlu0 %194
    %196 = vrot.lane.b32.xlu0 %v181, 96
    %v197 = vpop.permute.xlu0 %196
    %vm198 = vcmask 64512
    %v200 = vsel %vm198, %v170, 0
    %v203 = vsel %vm198, %v171, 0
    %v205 = vsel %vm198, %v195, 0
    %v207 = vsel %vm198, %v197, 0
    %209 = vmatprep.subr.mxu0 0.0
    %210 = vmatpush1.xpose.msra.mxu0 %v205
    %211 = vmatprep.subr.mxu0 0.0
    %212 = vmatpush1.xpose.msra.mxu0 %v207
    %213 = vmatprep.subr.mxu0 0.0
    %214 = vmatpush1.xpose.msra.mxu0 0.0
    %215 = vmatprep.subr.mxu0 0.0
    %216 = vmatpush1.xpose.msra.mxu0 0.0
    %217 = vmatprep.subr.mxu0 0.0
    %218 = vmatpush1.xpose.msra.mxu0 0.0
    %219 = vmatprep.subr.mxu0 0.0
    %220 = vmatpush1.xpose.msra.mxu0 0.0
    %221 = vmatprep.subr.mxu0 0.0
    %222 = vmatpush1.xpose.msra.mxu0 0.0
    %223 = vmatprep.subr.mxu0 0.0
    %224 = vmatpush1.xpose.msra.mxu0 0.0
    %225 = vmatprep.subr.mxu0 0.0
    %226 = vmatpush1.xpose.msra.mxu0 0.0
    %227 = vmatprep.subr.mxu0 0.0
    %228 = vmatpush1.xpose.msra.mxu0 0.0
    %229 = vmatprep.subr.mxu0 0.0
    %230 = vmatpush1.xpose.msra.mxu0 0.0
    %231 = vmatprep.subr.mxu0 0.0
    %232 = vmatpush1.xpose.msra.mxu0 0.0
    %233 = vmatprep.subr.mxu0 0.0
    %234 = vmatpush1.xpose.msra.mxu0 0.0
    %235 = vmatprep.subr.mxu0 0.0
    %236 = vmatpush1.xpose.msra.mxu0 0.0
    %237 = vmatprep.subr.mxu0 0.0
    %238 = vmatpush1.xpose.msra.mxu0 0.0
    %239 = vmatprep.subr.mxu0 0.0
    %240 = vmatpush1.xpose.msra.mxu0 0.0
    %241 = vmatprep.subr.mxu0 0.0
    %242 = vmatpush1.xpose.msra.mxu0 0.0
    %243 = vmatprep.subr.mxu0 0.0
    %244 = vmatpush1.xpose.msra.mxu0 0.0
    %245 = vmatprep.subr.mxu0 0.0
    %246 = vmatpush1.xpose.msra.mxu0 0.0
    %247 = vmatprep.subr.mxu0 0.0
    %248 = vmatpush1.xpose.msra.mxu0 0.0
    %249 = vmatprep.subr.mxu0 0.0
    %250 = vmatpush1.xpose.msra.mxu0 0.0
    %251 = vmatprep.subr.mxu0 0.0
    %252 = vmatpush1.xpose.msra.mxu0 0.0
    %253 = vmatprep.subr.mxu0 0.0
    %254 = vmatpush1.xpose.msra.mxu0 0.0
    %255 = vmatprep.subr.mxu0 0.0
    %256 = vmatpush1.xpose.msra.mxu0 0.0
    %257 = vmatprep.subr.mxu0 0.0
    %258 = vmatpush1.xpose.msra.mxu0 0.0
    %259 = vmatprep.subr.mxu0 0.0
    %260 = vmatpush1.xpose.msra.mxu0 0.0
    %261 = vmatprep.subr.mxu0 0.0
    %262 = vmatpush1.xpose.msra.mxu0 0.0
    %263 = vmatprep.subr.mxu0 0.0
    %264 = vmatpush1.xpose.msra.mxu0 0.0
    %265 = vmatprep.subr.mxu0 0.0
    %266 = vmatpush1.xpose.msra.mxu0 0.0
    %267 = vmatprep.subr.mxu0 0.0
    %268 = vmatpush1.xpose.msra.mxu0 0.0
    %269 = vmatprep.subr.mxu0 0.0
    %270 = vmatpush1.xpose.msra.mxu0 0.0
    %271 = vmatprep.subr.mxu0 0.0
    %272 = vmatpush1.xpose.msra.mxu0 0.0
    %273 = vmatprep.mubr.f32.mxu0 0.0
    %274 = vmatmul.mubr.f32.gmra.mrb[0].mxu0 %v200
    %v275 = vpop.f32.mrb[0].mxu0
    %v276 = vadd.f32 %v82, %v275
    %v277 = vpop.f32.mrb[0].mxu0
    %278 = vmatprep.mubr.f32.mxu0 0.0
    %279 = vmatmul.mubr.f32.gmra.mrb[0].mxu0 %v203
    %v280 = vpop.f32.mrb[0].mxu0
    %v281 = vadd.f32 %v83, %v280
    %v282 = vpop.f32.mrb[0].mxu0
    %283 = vdwg.mxu0
    %vm284 = vcmask 130048
    %v285 = vsel %vm284, %v276, -inf
    %286 = vmax.xlane.f32.xlu0 %v285
    %v287 = vpop.xlane.xlu0 %286
    %v288 = vsel %vm284, %v281, -inf
    %289 = vmax.xlane.f32.xlu0 %v288
    %v290 = vpop.xlane.xlu0 %289
    %v291 = vsub.f32 %v276, %v287
    %v292 = vsub.f32 %v281, %v290
    %v293 = vmul.f32 %v291, 1.442695
    %v294 = vpow.pop %v293
    %v295 = vmul.f32 %v292, 1.442695
    %v296 = vpow.pop %v295
    %v297 = vsel %vm284, %v294, 0.0
    %298 = vadd.xlane.f32.xlu0 %v297
    %v299 = vpop.xlane.xlu0 %298
    %v300 = vsel %vm284, %v296, 0.0
    %301 = vadd.xlane.f32.xlu0 %v300
    %v302 = vpop.xlane.xlu0 %301
    %v303 = vrcp.pop %v299
    %v304 = vrcp.pop %v302
    %v305 = vmul.f32 %v294, %v303
    %v306 = vmul.f32 %v296, %v304
    %309 = vrot.lane.b32.xlu0 %v190, 64
    %v310 = vpop.permute.xlu0 %309
    %311 = vrot.lane.b32.xlu0 %v191, 64
    %v312 = vpop.permute.xlu0 %311
    %v316 = vsel %vm284, %v305, 0
    %v319 = vsel %vm284, %v306, 0
    %321 = vmatprep.subr.mxu0 0.0
    %322 = vmatpush1.msra.mxu0 %v310
    %323 = vmatprep.subr.mxu0 0.0
    %324 = vmatpush1.msra.mxu0 %v312
    %325 = vmatprep.subr.mxu0 0.0
    %326 = vmatpush1.msra.mxu0 0.0
    %327 = vmatprep.subr.mxu0 0.0
    %328 = vmatpush1.msra.mxu0 0.0
    %329 = vmatprep.subr.mxu0 0.0
    %330 = vmatpush1.msra.mxu0 0.0
    %331 = vmatprep.subr.mxu0 0.0
    %332 = vmatpush1.msra.mxu0 0.0
    %333 = vmatprep.subr.mxu0 0.0
    %334 = vmatpush1.msra.mxu0 0.0
    %335 = vmatprep.subr.mxu0 0.0
    %336 = vmatpush1.msra.mxu0 0.0
    %337 = vmatprep.subr.mxu0 0.0
    %338 = vmatpush1.msra.mxu0 0.0
    %339 = vmatprep.subr.mxu0 0.0
    %340 = vmatpush1.msra.mxu0 0.0
    %341 = vmatprep.subr.mxu0 0.0
    %342 = vmatpush1.msra.mxu0 0.0
    %343 = vmatprep.subr.mxu0 0.0
    %344 = vmatpush1.msra.mxu0 0.0
    %345 = vmatprep.subr.mxu0 0.0
    %346 = vmatpush1.msra.mxu0 0.0
    %347 = vmatprep.subr.mxu0 0.0
    %348 = vmatpush1.msra.mxu0 0.0
    %349 = vmatprep.subr.mxu0 0.0
    %350 = vmatpush1.msra.mxu0 0.0
    %351 = vmatprep.subr.mxu0 0.0
    %352 = vmatpush1.msra.mxu0 0.0
    %353 = vmatprep.subr.mxu0 0.0
    %354 = vmatpush1.msra.mxu0 0.0
    %355 = vmatprep.subr.mxu0 0.0
    %356 = vmatpush1.msra.mxu0 0.0
    %357 = vmatprep.subr.mxu0 0.0
    %358 = vmatpush1.msra.mxu0 0.0
    %359 = vmatprep.subr.mxu0 0.0
    %360 = vmatpush1.msra.mxu0 0.0
    %361 = vmatprep.subr.mxu0 0.0
    %362 = vmatpush1.msra.mxu0 0.0
    %363 = vmatprep.subr.mxu0 0.0
    %364 = vmatpush1.msra.mxu0 0.0
    %365 = vmatprep.subr.mxu0 0.0
    %366 = vmatpush1.msra.mxu0 0.0
    %367 = vmatprep.subr.mxu0 0.0
    %368 = vmatpush1.msra.mxu0 0.0
    %369 = vmatprep.subr.mxu0 0.0
    %370 = vmatpush1.msra.mxu0 0.0
    %371 = vmatprep.subr.mxu0 0.0
    %372 = vmatpush1.msra.mxu0 0.0
    %373 = vmatprep.subr.mxu0 0.0
    %374 = vmatpush1.msra.mxu0 0.0
    %375 = vmatprep.subr.mxu0 0.0
    %376 = vmatpush1.msra.mxu0 0.0
    %377 = vmatprep.subr.mxu0 0.0
    %378 = vmatpush1.msra.mxu0 0.0
    %379 = vmatprep.subr.mxu0 0.0
    %380 = vmatpush1.msra.mxu0 0.0
    %381 = vmatprep.subr.mxu0 0.0
    %382 = vmatpush1.msra.mxu0 0.0
    %383 = vmatprep.subr.mxu0 0.0
    %384 = vmatpush1.msra.mxu0 0.0
    %385 = vmatprep.mubr.f32.mxu0 0.0
    %386 = vmatmul.mubr.f32.gmra.mrb[0].mxu0 %v316
    %v387 = vpop.f32.mrb[0].mxu0
    %v388 = vadd.f32 0.0, %v387
    %v389 = vpop.f32.mrb[0].mxu0
    %390 = vmatprep.mubr.f32.mxu0 0.0
    %391 = vmatmul.mubr.f32.gmra.mrb[0].mxu0 %v319
    %v392 = vpop.f32.mrb[0].mxu0
    %v393 = vadd.f32 0.0, %v392
    %v394 = vpop.f32.mrb[0].mxu0
    %395 = vdwg.mxu0
    %396 = vrot.lane.b32.xlu0 %v170, 120
    %v397 = vpop.permute.xlu0 %396
    %398 = vrot.lane.b32.xlu0 %v171, 120
    %v399 = vpop.permute.xlu0 %398
    %400 = vrot.lane.b32.xlu0 %v180, 88
    %v401 = vpop.permute.xlu0 %400
    %402 = vrot.lane.b32.xlu0 %v181, 88
    %v403 = vpop.permute.xlu0 %402
    %v404 = vsel %vm198, %v397, 0
    %v406 = vsel %vm198, %v399, 0
    %v408 = vsel %vm198, %v401, 0
    %v410 = vsel %vm198, %v403, 0
    %412 = vmatprep.subr.mxu0 0.0
    %413 = vmatpush1.xpose.msra.mxu0 %v408
    %414 = vmatprep.subr.mxu0 0.0
    %415 = vmatpush1.xpose.msra.mxu0 %v410
    %416 = vmatprep.subr.mxu0 0.0
    %417 = vmatpush1.xpose.msra.mxu0 0.0
    %418 = vmatprep.subr.mxu0 0.0
    %419 = vmatpush1.xpose.msra.mxu0 0.0
    %420 = vmatprep.subr.mxu0 0.0
    %421 = vmatpush1.xpose.msra.mxu0 0.0
    %422 = vmatprep.subr.mxu0 0.0
    %423 = vmatpush1.xpose.msra.mxu0 0.0
    %424 = vmatprep.subr.mxu0 0.0
    %425 = vmatpush1.xpose.msra.mxu0 0.0
    %426 = vmatprep.subr.mxu0 0.0
    %427 = vmatpush1.xpose.msra.mxu0 0.0
    %428 = vmatprep.subr.mxu0 0.0
    %429 = vmatpush1.xpose.msra.mxu0 0.0
    %430 = vmatprep.subr.mxu0 0.0
    %431 = vmatpush1.xpose.msra.mxu0 0.0
    %432 = vmatprep.subr.mxu0 0.0
    %433 = vmatpush1.xpose.msra.mxu0 0.0
    %434 = vmatprep.subr.mxu0 0.0
    %435 = vmatpush1.xpose.msra.mxu0 0.0
    %436 = vmatprep.subr.mxu0 0.0
    %437 = vmatpush1.xpose.msra.mxu0 0.0
    %438 = vmatprep.subr.mxu0 0.0
    %439 = vmatpush1.xpose.msra.mxu0 0.0
    %440 = vmatprep.subr.mxu0 0.0
    %441 = vmatpush1.xpose.msra.mxu0 0.0
    %442 = vmatprep.subr.mxu0 0.0
    %443 = vmatpush1.xpose.msra.mxu0 0.0
    %444 = vmatprep.subr.mxu0 0.0
    %445 = vmatpush1.xpose.msra.mxu0 0.0
    %446 = vmatprep.subr.mxu0 0.0
    %447 = vmatpush1.xpose.msra.mxu0 0.0
    %448 = vmatprep.subr.mxu0 0.0
    %449 = vmatpush1.xpose.msra.mxu0 0.0
    %450 = vmatprep.subr.mxu0 0.0
    %451 = vmatpush1.xpose.msra.mxu0 0.0
    %452 = vmatprep.subr.mxu0 0.0
    %453 = vmatpush1.xpose.msra.mxu0 0.0
    %454 = vmatprep.subr.mxu0 0.0
    %455 = vmatpush1.xpose.msra.mxu0 0.0
    %456 = vmatprep.subr.mxu0 0.0
    %457 = vmatpush1.xpose.msra.mxu0 0.0
    %458 = vmatprep.subr.mxu0 0.0
    %459 = vmatpush1.xpose.msra.mxu0 0.0
    %460 = vmatprep.subr.mxu0 0.0
    %461 = vmatpush1.xpose.msra.mxu0 0.0
    %462 = vmatprep.subr.mxu0 0.0
    %463 = vmatpush1.xpose.msra.mxu0 0.0
    %464 = vmatprep.subr.mxu0 0.0
    %465 = vmatpush1.xpose.msra.mxu0 0.0
    %466 = vmatprep.subr.mxu0 0.0
    %467 = vmatpush1.xpose.msra.mxu0 0.0
    %468 = vmatprep.subr.mxu0 0.0
    %469 = vmatpush1.xpose.msra.mxu0 0.0
    %470 = vmatprep.subr.mxu0 0.0
    %471 = vmatpush1.xpose.msra.mxu0 0.0
    %472 = vmatprep.subr.mxu0 0.0
    %473 = vmatpush1.xpose.msra.mxu0 0.0
    %474 = vmatprep.subr.mxu0 0.0
    %475 = vmatpush1.xpose.msra.mxu0 0.0
    %476 = vmatprep.mubr.f32.mxu0 0.0
    %477 = vmatmul.mubr.f32.gmra.mrb[0].mxu0 %v404
    %v478 = vpop.f32.mrb[0].mxu0
    %v479 = vadd.f32 %v82, %v478
    %v480 = vpop.f32.mrb[0].mxu0
    %481 = vmatprep.mubr.f32.mxu0 0.0
    %482 = vmatmul.mubr.f32.gmra.mrb[0].mxu0 %v406
    %v483 = vpop.f32.mrb[0].mxu0
    %v484 = vadd.f32 %v83, %v483
    %v485 = vpop.f32.mrb[0].mxu0
    %486 = vdwg.mxu0
    %v487 = vsel %vm284, %v479, -inf
    %488 = vmax.xlane.f32.xlu0 %v487
    %v489 = vpop.xlane.xlu0 %488
    %v490 = vsel %vm284, %v484, -inf
    %491 = vmax.xlane.f32.xlu0 %v490
    %v492 = vpop.xlane.xlu0 %491
    %v493 = vsub.f32 %v479, %v489
    %v494 = vsub.f32 %v484, %v492
    %v495 = vmul.f32 %v493, 1.442695
    %v496 = vpow.pop %v495
    %v497 = vmul.f32 %v494, 1.442695
    %v498 = vpow.pop %v497
    %v499 = vsel %vm284, %v496, 0.0
    %500 = vadd.xlane.f32.xlu0 %v499
    %v501 = vpop.xlane.xlu0 %500
    %v502 = vsel %vm284, %v498, 0.0
    %503 = vadd.xlane.f32.xlu0 %v502
    %v504 = vpop.xlane.xlu0 %503
    %v505 = vrcp.pop %v501
    %v506 = vrcp.pop %v504
    %v507 = vmul.f32 %v496, %v505
    %v508 = vmul.f32 %v498, %v506
    %509 = vrot.lane.b32.xlu0 %v190, 56
    %v510 = vpop.permute.xlu0 %509
    %511 = vrot.lane.b32.xlu0 %v191, 56
    %v512 = vpop.permute.xlu0 %511
    %v516 = vsel %vm284, %v507, 0
    %v519 = vsel %vm284, %v508, 0
    %521 = vmatprep.subr.mxu0 0.0
    %522 = vmatpush1.msra.mxu0 %v510
    %523 = vmatprep.subr.mxu0 0.0
    %524 = vmatpush1.msra.mxu0 %v512
    %525 = vmatprep.subr.mxu0 0.0
    %526 = vmatpush1.msra.mxu0 0.0
    %527 = vmatprep.subr.mxu0 0.0
    %528 = vmatpush1.msra.mxu0 0.0
    %529 = vmatprep.subr.mxu0 0.0
    %530 = vmatpush1.msra.mxu0 0.0
    %531 = vmatprep.subr.mxu0 0.0
    %532 = vmatpush1.msra.mxu0 0.0
    %533 = vmatprep.subr.mxu0 0.0
    %534 = vmatpush1.msra.mxu0 0.0
    %535 = vmatprep.subr.mxu0 0.0
    %536 = vmatpush1.msra.mxu0 0.0
    %537 = vmatprep.subr.mxu0 0.0
    %538 = vmatpush1.msra.mxu0 0.0
    %539 = vmatprep.subr.mxu0 0.0
    %540 = vmatpush1.msra.mxu0 0.0
    %541 = vmatprep.subr.mxu0 0.0
    %542 = vmatpush1.msra.mxu0 0.0
    %543 = vmatprep.subr.mxu0 0.0
    %544 = vmatpush1.msra.mxu0 0.0
    %545 = vmatprep.subr.mxu0 0.0
    %546 = vmatpush1.msra.mxu0 0.0
    %547 = vmatprep.subr.mxu0 0.0
    %548 = vmatpush1.msra.mxu0 0.0
    %549 = vmatprep.subr.mxu0 0.0
    %550 = vmatpush1.msra.mxu0 0.0
    %551 = vmatprep.subr.mxu0 0.0
    %552 = vmatpush1.msra.mxu0 0.0
    %553 = vmatprep.subr.mxu0 0.0
    %554 = vmatpush1.msra.mxu0 0.0
    %555 = vmatprep.subr.mxu0 0.0
    %556 = vmatpush1.msra.mxu0 0.0
    %557 = vmatprep.subr.mxu0 0.0
    %558 = vmatpush1.msra.mxu0 0.0
    %559 = vmatprep.subr.mxu0 0.0
    %560 = vmatpush1.msra.mxu0 0.0
    %561 = vmatprep.subr.mxu0 0.0
    %562 = vmatpush1.msra.mxu0 0.0
    %563 = vmatprep.subr.mxu0 0.0
    %564 = vmatpush1.msra.mxu0 0.0
    %565 = vmatprep.subr.mxu0 0.0
    %566 = vmatpush1.msra.mxu0 0.0
    %567 = vmatprep.subr.mxu0 0.0
    %568 = vmatpush1.msra.mxu0 0.0
    %569 = vmatprep.subr.mxu0 0.0
    %570 = vmatpush1.msra.mxu0 0.0
    %571 = vmatprep.subr.mxu0 0.0
    %572 = vmatpush1.msra.mxu0 0.0
    %573 = vmatprep.subr.mxu0 0.0
    %574 = vmatpush1.msra.mxu0 0.0
    %575 = vmatprep.subr.mxu0 0.0
    %576 = vmatpush1.msra.mxu0 0.0
    %577 = vmatprep.subr.mxu0 0.0
    %578 = vmatpush1.msra.mxu0 0.0
    %579 = vmatprep.subr.mxu0 0.0
    %580 = vmatpush1.msra.mxu0 0.0
    %581 = vmatprep.subr.mxu0 0.0
    %582 = vmatpush1.msra.mxu0 0.0
    %583 = vmatprep.subr.mxu0 0.0
    %584 = vmatpush1.msra.mxu0 0.0
    %585 = vmatprep.mubr.f32.mxu0 0.0
    %586 = vmatmul.mubr.f32.gmra.mrb[0].mxu0 %v516
    %v587 = vpop.f32.mrb[0].mxu0
    %v588 = vadd.f32 0.0, %v587
    %v589 = vpop.f32.mrb[0].mxu0
    %590 = vmatprep.mubr.f32.mxu0 0.0
    %591 = vmatmul.mubr.f32.gmra.mrb[0].mxu0 %v519
    %v592 = vpop.f32.mrb[0].mxu0
    %v593 = vadd.f32 0.0, %v592
    %v594 = vpop.f32.mrb[0].mxu0
    %595 = vdwg.mxu0
    %597 = vrot.lane.b32.xlu0 %v75, 32
    %v598 = vpop.permute.xlu0 %597
    %v601 = vsel %vm198, %v588, 0
    %v604 = vsel %vm198, %v593, 0
    %606 = vmatprep.subr.mxu0 0.0
    %607 = vmatpush1.msra.mxu0 %v598
    %608 = vmatprep.subr.mxu0 0.0
    %609 = vmatpush1.msra.mxu0 0.0
    %610 = vmatprep.subr.mxu0 0.0
    %611 = vmatpush1.msra.mxu0 0.0
    %612 = vmatprep.subr.mxu0 0.0
    %613 = vmatpush1.msra.mxu0 0.0
    %614 = vmatprep.subr.mxu0 0.0
    %615 = vmatpush1.msra.mxu0 0.0
    %616 = vmatprep.subr.mxu0 0.0
    %617 = vmatpush1.msra.mxu0 0.0
    %618 = vmatprep.subr.mxu0 0.0
    %619 = vmatpush1.msra.mxu0 0.0
    %620 = vmatprep.subr.mxu0 0.0
    %621 = vmatpush1.msra.mxu0 0.0
    %622 = vmatprep.subr.mxu0 0.0
    %623 = vmatpush1.msra.mxu0 0.0
    %624 = vmatprep.subr.mxu0 0.0
    %625 = vmatpush1.msra.mxu0 0.0
    %626 = vmatprep.subr.mxu0 0.0
    %627 = vmatpush1.msra.mxu0 0.0
    %628 = vmatprep.subr.mxu0 0.0
    %629 = vmatpush1.msra.mxu0 0.0
    %630 = vmatprep.subr.mxu0 0.0
    %631 = vmatpush1.msra.mxu0 0.0
    %632 = vmatprep.subr.mxu0 0.0
    %633 = vmatpush1.msra.mxu0 0.0
    %634 = vmatprep.subr.mxu0 0.0
    %635 = vmatpush1.msra.mxu0 0.0
    %636 = vmatprep.subr.mxu0 0.0
    %637 = vmatpush1.msra.mxu0 0.0
    %638 = vmatprep.subr.mxu0 0.0
    %639 = vmatpush1.msra.mxu0 0.0
    %640 = vmatprep.subr.mxu0 0.0
    %641 = vmatpush1.msra.mxu0 0.0
    %642 = vmatprep.subr.mxu0 0.0
    %643 = vmatpush1.msra.mxu0 0.0
    %644 = vmatprep.subr.mxu0 0.0
    %645 = vmatpush1.msra.mxu0 0.0
    %646 = vmatprep.subr.mxu0 0.0
    %647 = vmatpush1.msra.mxu0 0.0
    %648 = vmatprep.subr.mxu0 0.0
    %649 = vmatpush1.msra.mxu0 0.0
    %650 = vmatprep.subr.mxu0 0.0
    %651 = vmatpush1.msra.mxu0 0.0
    %652 = vmatprep.subr.mxu0 0.0
    %653 = vmatpush1.msra.mxu0 0.0
    %654 = vmatprep.subr.mxu0 0.0
    %655 = vmatpush1.msra.mxu0 0.0
    %656 = vmatprep.subr.mxu0 0.0
    %657 = vmatpush1.msra.mxu0 0.0
    %658 = vmatprep.subr.mxu0 0.0
    %659 = vmatpush1.msra.mxu0 0.0
    %660 = vmatprep.subr.mxu0 0.0
    %661 = vmatpush1.msra.mxu0 0.0
    %662 = vmatprep.subr.mxu0 0.0
    %663 = vmatpush1.msra.mxu0 0.0
    %664 = vmatprep.subr.mxu0 0.0
    %665 = vmatpush1.msra.mxu0 0.0
    %666 = vmatprep.subr.mxu0 0.0
    %667 = vmatpush1.msra.mxu0 0.0
    %668 = vmatprep.subr.mxu0 0.0
    %669 = vmatpush1.msra.mxu0 0.0
    %670 = vmatprep.mubr.f32.mxu0 0.0
    %671 = vmatmul.mubr.f32.gmra.mrb[0].mxu0 %v601
    %v672 = vpop.f32.mrb[0].mxu0
    %v673 = vadd.f32 0.0, %v672
    %v674 = vpop.f32.mrb[0].mxu0
    %675 = vmatprep.mubr.f32.mxu0 0.0
    %676 = vmatmul.mubr.f32.gmra.mrb[0].mxu0 %v604
    %v677 = vpop.f32.mrb[0].mxu0
    %v678 = vadd.f32 0.0, %v677
    %v679 = vpop.f32.mrb[0].mxu0
    %680 = vdwg.mxu0
    %682 = vrot.lane.b32.xlu0 %v73, 32
    %v683 = vpop.permute.xlu0 %682
    %v686 = vsel %vm198, %v388, 0
    %v689 = vsel %vm198, %v393, 0
    %691 = vmatprep.subr.mxu0 0.0
    %692 = vmatpush1.msra.mxu0 %v683
    %693 = vmatprep.subr.mxu0 0.0
    %694 = vmatpush1.msra.mxu0 0.0
    %695 = vmatprep.subr.mxu0 0.0
    %696 = vmatpush1.msra.mxu0 0.0
    %697 = vmatprep.subr.mxu0 0.0
    %698 = vmatpush1.msra.mxu0 0.0
    %699 = vmatprep.subr.mxu0 0.0
    %700 = vmatpush1.msra.mxu0 0.0
    %701 = vmatprep.subr.mxu0 0.0
    %702 = vmatpush1.msra.mxu0 0.0
    %703 = vmatprep.subr.mxu0 0.0
    %704 = vmatpush1.msra.mxu0 0.0
    %705 = vmatprep.subr.mxu0 0.0
    %706 = vmatpush1.msra.mxu0 0.0
    %707 = vmatprep.subr.mxu0 0.0
    %708 = vmatpush1.msra.mxu0 0.0
    %709 = vmatprep.subr.mxu0 0.0
    %710 = vmatpush1.msra.mxu0 0.0
    %711 = vmatprep.subr.mxu0 0.0
    %712 = vmatpush1.msra.mxu0 0.0
    %713 = vmatprep.subr.mxu0 0.0
    %714 = vmatpush1.msra.mxu0 0.0
    %715 = vmatprep.subr.mxu0 0.0
    %716 = vmatpush1.msra.mxu0 0.0
    %717 = vmatprep.subr.mxu0 0.0
    %718 = vmatpush1.msra.mxu0 0.0
    %719 = vmatprep.subr.mxu0 0.0
    %720 = vmatpush1.msra.mxu0 0.0
    %721 = vmatprep.subr.mxu0 0.0
    %722 = vmatpush1.msra.mxu0 0.0
    %723 = vmatprep.subr.mxu0 0.0
    %724 = vmatpush1.msra.mxu0 0.0
    %725 = vmatprep.subr.mxu0 0.0
    %726 = vmatpush1.msra.mxu0 0.0
    %727 = vmatprep.subr.mxu0 0.0
    %728 = vmatpush1.msra.mxu0 0.0
    %729 = vmatprep.subr.mxu0 0.0
    %730 = vmatpush1.msra.mxu0 0.0
    %731 = vmatprep.subr.mxu0 0.0
    %732 = vmatpush1.msra.mxu0 0.0
    %733 = vmatprep.subr.mxu0 0.0
    %734 = vmatpush1.msra.mxu0 0.0
    %735 = vmatprep.subr.mxu0 0.0
    %736 = vmatpush1.msra.mxu0 0.0
    %737 = vmatprep.subr.mxu0 0.0
    %738 = vmatpush1.msra.mxu0 0.0
    %739 = vmatprep.subr.mxu0 0.0
    %740 = vmatpush1.msra.mxu0 0.0
    %741 = vmatprep.subr.mxu0 0.0
    %742 = vmatpush1.msra.mxu0 0.0
    %743 = vmatprep.subr.mxu0 0.0
    %744 = vmatpush1.msra.mxu0 0.0
    %745 = vmatprep.subr.mxu0 0.0
    %746 = vmatpush1.msra.mxu0 0.0
    %747 = vmatprep.subr.mxu0 0.0
    %748 = vmatpush1.msra.mxu0 0.0
    %749 = vmatprep.subr.mxu0 0.0
    %750 = vmatpush1.msra.mxu0 0.0
    %751 = vmatprep.subr.mxu0 0.0
    %752 = vmatpush1.msra.mxu0 0.0
    %753 = vmatprep.subr.mxu0 0.0
    %754 = vmatpush1.msra.mxu0 0.0
    %755 = vmatprep.mubr.f32.mxu0 0.0
    %756 = vmatmul.mubr.f32.gmra.mrb[0].mxu0 %v686
    %v757 = vpop.f32.mrb[0].mxu0
    %v758 = vadd.f32 %v673, %v757
    %v759 = vpop.f32.mrb[0].mxu0
    %760 = vmatprep.mubr.f32.mxu0 0.0
    %761 = vmatmul.mubr.f32.gmra.mrb[0].mxu0 %v689
    %v762 = vpop.f32.mrb[0].mxu0
    %v763 = vadd.f32 %v678, %v762
    %v764 = vpop.f32.mrb[0].mxu0
    %765 = vdwg.mxu0
    %766 = vrot.lane.b32.xlu0 %v170, 112
    %v767 = vpop.permute.xlu0 %766
    %768 = vrot.lane.b32.xlu0 %v171, 112
    %v769 = vpop.permute.xlu0 %768
    %770 = vrot.lane.b32.xlu0 %v180, 80
    %v771 = vpop.permute.xlu0 %770
    %772 = vrot.lane.b32.xlu0 %v181, 80
    %v773 = vpop.permute.xlu0 %772
    %v774 = vsel %vm198, %v767, 0
    %v776 = vsel %vm198, %v769, 0
    %v778 = vsel %vm198, %v771, 0
    %v780 = vsel %vm198, %v773, 0
    %782 = vmatprep.subr.mxu0 0.0
    %783 = vmatpush1.xpose.msra.mxu0 %v778
    %784 = vmatprep.subr.mxu0 0.0
    %785 = vmatpush1.xpose.msra.mxu0 %v780
    %786 = vmatprep.subr.mxu0 0.0
    %787 = vmatpush1.xpose.msra.mxu0 0.0
    %788 = vmatprep.subr.mxu0 0.0
    %789 = vmatpush1.xpose.msra.mxu0 0.0
    %790 = vmatprep.subr.mxu0 0.0
    %791 = vmatpush1.xpose.msra.mxu0 0.0
    %792 = vmatprep.subr.mxu0 0.0
    %793 = vmatpush1.xpose.msra.mxu0 0.0
    %794 = vmatprep.subr.mxu0 0.0
    %795 = vmatpush1.xpose.msra.mxu0 0.0
    %796 = vmatprep.subr.mxu0 0.0
    %797 = vmatpush1.xpose.msra.mxu0 0.0
    %798 = vmatprep.subr.mxu0 0.0
    %799 = vmatpush1.xpose.msra.mxu0 0.0
    %800 = vmatprep.subr.mxu0 0.0
    %801 = vmatpush1.xpose.msra.mxu0 0.0
    %802 = vmatprep.subr.mxu0 0.0
    %803 = vmatpush1.xpose.msra.mxu0 0.0
    %804 = vmatprep.subr.mxu0 0.0
    %805 = vmatpush1.xpose.msra.mxu0 0.0
    %806 = vmatprep.subr.mxu0 0.0
    %807 = vmatpush1.xpose.msra.mxu0 0.0
    %808 = vmatprep.subr.mxu0 0.0
    %809 = vmatpush1.xpose.msra.mxu0 0.0
    %810 = vmatprep.subr.mxu0 0.0
    %811 = vmatpush1.xpose.msra.mxu0 0.0
    %812 = vmatprep.subr.mxu0 0.0
    %813 = vmatpush1.xpose.msra.mxu0 0.0
    %814 = vmatprep.subr.mxu0 0.0
    %815 = vmatpush1.xpose.msra.mxu0 0.0
    %816 = vmatprep.subr.mxu0 0.0
    %817 = vmatpush1.xpose.msra.mxu0 0.0
    %818 = vmatprep.subr.mxu0 0.0
    %819 = vmatpush1.xpose.msra.mxu0 0.0
    %820 = vmatprep.subr.mxu0 0.0
    %821 = vmatpush1.xpose.msra.mxu0 0.0
    %822 = vmatprep.subr.mxu0 0.0
    %823 = vmatpush1.xpose.msra.mxu0 0.0
    %824 = vmatprep.subr.mxu0 0.0
    %825 = vmatpush1.xpose.msra.mxu0 0.0
    %826 = vmatprep.subr.mxu0 0.0
    %827 = vmatpush1.xpose.msra.mxu0 0.0
    %828 = vmatprep.subr.mxu0 0.0
    %829 = vmatpush1.xpose.msra.mxu0 0.0
    %830 = vmatprep.subr.mxu0 0.0
    %831 = vmatpush1.xpose.msra.mxu0 0.0
    %832 = vmatprep.subr.mxu0 0.0
    %833 = vmatpush1.xpose.msra.mxu0 0.0
    %834 = vmatprep.subr.mxu0 0.0
    %835 = vmatpush1.xpose.msra.mxu0 0.0
    %836 = vmatprep.subr.mxu0 0.0
    %837 = vmatpush1.xpose.msra.mxu0 0.0
    %838 = vmatprep.subr.mxu0 0.0
    %839 = vmatpush1.xpose.msra.mxu0 0.0
    %840 = vmatprep.subr.mxu0 0.0
    %841 = vmatpush1.xpose.msra.mxu0 0.0
    %842 = vmatprep.subr.mxu0 0.0
    %843 = vmatpush1.xpose.msra.mxu0 0.0
    %844 = vmatprep.subr.mxu0 0.0
    %845 = vmatpush1.xpose.msra.mxu0 0.0
    %846 = vmatprep.mubr.f32.mxu0 0.0
    %847 = vmatmul.mubr.f32.gmra.mrb[0].mxu0 %v774
    %v848 = vpop.f32.mrb[0].mxu0
    %v849 = vadd.f32 %v82, %v848
    %v850 = vpop.f32.mrb[0].mxu0
    %851 = vmatprep.mubr.f32.mxu0 0.0
    %852 = vmatmul.mubr.f32.gmra.mrb[0].mxu0 %v776
    %v853 = vpop.f32.mrb[0].mxu0
    %v854 = vadd.f32 %v83, %v853
    %v855 = vpop.f32.mrb[0].mxu0
    %856 = vdwg.mxu0
    %v857 = vsel %vm284, %v849, -inf
    %858 = vmax.xlane.f32.xlu0 %v857
    %v859 = vpop.xlane.xlu0 %858
    %v860 = vsel %vm284, %v854, -inf
    %861 = vmax.xlane.f32.xlu0 %v860
    %v862 = vpop.xlane.xlu0 %861
    %v863 = vsub.f32 %v849, %v859
    %v864 = vsub.f32 %v854, %v862
    %v865 = vmul.f32 %v863, 1.442695
    %v866 = vpow.pop %v865
    %v867 = vmul.f32 %v864, 1.442695
    %v868 = vpow.pop %v867
    %v869 = vsel %vm284, %v866, 0.0
    %870 = vadd.xlane.f32.xlu0 %v869
    %v871 = vpop.xlane.xlu0 %870
    %v872 = vsel %vm284, %v868, 0.0
    %873 = vadd.xlane.f32.xlu0 %v872
    %v874 = vpop.xlane.xlu0 %873
    %v875 = vrcp.pop %v871
    %v876 = vrcp.pop %v874
    %v877 = vmul.f32 %v866, %v875
    %v878 = vmul.f32 %v868, %v876
    %879 = vrot.lane.b32.xlu0 %v190, 48
    %v880 = vpop.permute.xlu0 %879
    %881 = vrot.lane.b32.xlu0 %v191, 48
    %v882 = vpop.permute.xlu0 %881
    %v886 = vsel %vm284, %v877, 0
    %v889 = vsel %vm284, %v878, 0
    %891 = vmatprep.subr.mxu0 0.0
    %892 = vmatpush1.msra.mxu0 %v880
    %893 = vmatprep.subr.mxu0 0.0
    %894 = vmatpush1.msra.mxu0 %v882
    %895 = vmatprep.subr.mxu0 0.0
    %896 = vmatpush1.msra.mxu0 0.0
    %897 = vmatprep.subr.mxu0 0.0
    %898 = vmatpush1.msra.mxu0 0.0
    %899 = vmatprep.subr.mxu0 0.0
    %900 = vmatpush1.msra.mxu0 0.0
    %901 = vmatprep.subr.mxu0 0.0
    %902 = vmatpush1.msra.mxu0 0.0
    %903 = vmatprep.subr.mxu0 0.0
    %904 = vmatpush1.msra.mxu0 0.0
    %905 = vmatprep.subr.mxu0 0.0
    %906 = vmatpush1.msra.mxu0 0.0
    %907 = vmatprep.subr.mxu0 0.0
    %908 = vmatpush1.msra.mxu0 0.0
    %909 = vmatprep.subr.mxu0 0.0
    %910 = vmatpush1.msra.mxu0 0.0
    %911 = vmatprep.subr.mxu0 0.0
    %912 = vmatpush1.msra.mxu0 0.0
    %913 = vmatprep.subr.mxu0 0.0
    %914 = vmatpush1.msra.mxu0 0.0
    %915 = vmatprep.subr.mxu0 0.0
    %916 = vmatpush1.msra.mxu0 0.0
    %917 = vmatprep.subr.mxu0 0.0
    %918 = vmatpush1.msra.mxu0 0.0
    %919 = vmatprep.subr.mxu0 0.0
    %920 = vmatpush1.msra.mxu0 0.0
    %921 = vmatprep.subr.mxu0 0.0
    %922 = vmatpush1.msra.mxu0 0.0
    %923 = vmatprep.subr.mxu0 0.0
    %924 = vmatpush1.msra.mxu0 0.0
    %925 = vmatprep.subr.mxu0 0.0
    %926 = vmatpush1.msra.mxu0 0.0
    %927 = vmatprep.subr.mxu0 0.0
    %928 = vmatpush1.msra.mxu0 0.0
    %929 = vmatprep.subr.mxu0 0.0
    %930 = vmatpush1.msra.mxu0 0.0
    %931 = vmatprep.subr.mxu0 0.0
    %932 = vmatpush1.msra.mxu0 0.0
    %933 = vmatprep.subr.mxu0 0.0
    %934 = vmatpush1.msra.mxu0 0.0
    %935 = vmatprep.subr.mxu0 0.0
    %936 = vmatpush1.msra.mxu0 0.0
    %937 = vmatprep.subr.mxu0 0.0
    %938 = vmatpush1.msra.mxu0 0.0
    %939 = vmatprep.subr.mxu0 0.0
    %940 = vmatpush1.msra.mxu0 0.0
    %941 = vmatprep.subr.mxu0 0.0
    %942 = vmatpush1.msra.mxu0 0.0
    %943 = vmatprep.subr.mxu0 0.0
    %944 = vmatpush1.msra.mxu0 0.0
    %945 = vmatprep.subr.mxu0 0.0
    %946 = vmatpush1.msra.mxu0 0.0
    %947 = vmatprep.subr.mxu0 0.0
    %948 = vmatpush1.msra.mxu0 0.0
    %949 = vmatprep.subr.mxu0 0.0
    %950 = vmatpush1.msra.mxu0 0.0
    %951 = vmatprep.subr.mxu0 0.0
    %952 = vmatpush1.msra.mxu0 0.0
    %953 = vmatprep.subr.mxu0 0.0
    %954 = vmatpush1.msra.mxu0 0.0
    %955 = vmatprep.mubr.f32.mxu0 0.0
    %956 = vmatmul.mubr.f32.gmra.mrb[0].mxu0 %v886
    %v957 = vpop.f32.mrb[0].mxu0
    %v958 = vadd.f32 0.0, %v957
    %v959 = vpop.f32.mrb[0].mxu0
    %960 = vmatprep.mubr.f32.mxu0 0.0
    %961 = vmatmul.mubr.f32.gmra.mrb[0].mxu0 %v889
    %v962 = vpop.f32.mrb[0].mxu0
    %v963 = vadd.f32 0.0, %v962
    %v964 = vpop.f32.mrb[0].mxu0
    %965 = vdwg.mxu0
    %967 = vrot.lane.b32.xlu0 %v77, 32
    %v968 = vpop.permute.xlu0 %967
    %v971 = vsel %vm198, %v958, 0
    %v974 = vsel %vm198, %v963, 0
    %976 = vmatprep.subr.mxu0 0.0
    %977 = vmatpush1.msra.mxu0 %v968
    %978 = vmatprep.subr.mxu0 0.0
    %979 = vmatpush1.msra.mxu0 0.0
    %980 = vmatprep.subr.mxu0 0.0
    %981 = vmatpush1.msra.mxu0 0.0
    %982 = vmatprep.subr.mxu0 0.0
    %983 = vmatpush1.msra.mxu0 0.0
    %984 = vmatprep.subr.mxu0 0.0
    %985 = vmatpush1.msra.mxu0 0.0
    %986 = vmatprep.subr.mxu0 0.0
    %987 = vmatpush1.msra.mxu0 0.0
    %988 = vmatprep.subr.mxu0 0.0
    %989 = vmatpush1.msra.mxu0 0.0
    %990 = vmatprep.subr.mxu0 0.0
    %991 = vmatpush1.msra.mxu0 0.0
    %992 = vmatprep.subr.mxu0 0.0
    %993 = vmatpush1.msra.mxu0 0.0
    %994 = vmatprep.subr.mxu0 0.0
    %995 = vmatpush1.msra.mxu0 0.0
    %996 = vmatprep.subr.mxu0 0.0
    %997 = vmatpush1.msra.mxu0 0.0
    %998 = vmatprep.subr.mxu0 0.0
    %999 = vmatpush1.msra.mxu0 0.0
    %1000 = vmatprep.subr.mxu0 0.0
    %1001 = vmatpush1.msra.mxu0 0.0
    %1002 = vmatprep.subr.mxu0 0.0
    %1003 = vmatpush1.msra.mxu0 0.0
    %1004 = vmatprep.subr.mxu0 0.0
    %1005 = vmatpush1.msra.mxu0 0.0
    %1006 = vmatprep.subr.mxu0 0.0
    %1007 = vmatpush1.msra.mxu0 0.0
    %1008 = vmatprep.subr.mxu0 0.0
    %1009 = vmatpush1.msra.mxu0 0.0
    %1010 = vmatprep.subr.mxu0 0.0
    %1011 = vmatpush1.msra.mxu0 0.0
    %1012 = vmatprep.subr.mxu0 0.0
    %1013 = vmatpush1.msra.mxu0 0.0
    %1014 = vmatprep.subr.mxu0 0.0
    %1015 = vmatpush1.msra.mxu0 0.0
    %1016 = vmatprep.subr.mxu0 0.0
    %1017 = vmatpush1.msra.mxu0 0.0
    %1018 = vmatprep.subr.mxu0 0.0
    %1019 = vmatpush1.msra.mxu0 0.0
    %1020 = vmatprep.subr.mxu0 0.0
    %1021 = vmatpush1.msra.mxu0 0.0
    %1022 = vmatprep.subr.mxu0 0.0
    %1023 = vmatpush1.msra.mxu0 0.0
    %1024 = vmatprep.subr.mxu0 0.0
    %1025 = vmatpush1.msra.mxu0 0.0
    %1026 = vmatprep.subr.mxu0 0.0
    %1027 = vmatpush1.msra.mxu0 0.0
    %1028 = vmatprep.subr.mxu0 0.0
    %1029 = vmatpush1.msra.mxu0 0.0
    %1030 = vmatprep.subr.mxu0 0.0
    %1031 = vmatpush1.msra.mxu0 0.0
    %1032 = vmatprep.subr.mxu0 0.0
    %1033 = vmatpush1.msra.mxu0 0.0
    %1034 = vmatprep.subr.mxu0 0.0
    %1035 = vmatpush1.msra.mxu0 0.0
    %1036 = vmatprep.subr.mxu0 0.0
    %1037 = vmatpush1.msra.mxu0 0.0
    %1038 = vmatprep.subr.mxu0 0.0
    %1039 = vmatpush1.msra.mxu0 0.0
    %1040 = vmatprep.mubr.f32.mxu0 0.0
    %1041 = vmatmul.mubr.f32.gmra.mrb[0].mxu0 %v971
    %v1042 = vpop.f32.mrb[0].mxu0
    %v1043 = vadd.f32 0.0, %v1042
    %v1044 = vpop.f32.mrb[0].mxu0
    %1045 = vmatprep.mubr.f32.mxu0 0.0
    %1046 = vmatmul.mubr.f32.gmra.mrb[0].mxu0 %v974
    %v1047 = vpop.f32.mrb[0].mxu0
    %v1048 = vadd.f32 0.0, %v1047
    %v1049 = vpop.f32.mrb[0].mxu0
    %1050 = vdwg.mxu0
    %v1051 = vadd.f32 %v758, %v1043
    %v1052 = vadd.f32 %v763, %v1048
    %1053 = vrot.lane.b32.xlu0 %v170, 104
    %v1054 = vpop.permute.xlu0 %1053
    %1055 = vrot.lane.b32.xlu0 %v171, 104
    %v1056 = vpop.permute.xlu0 %1055
    %1057 = vrot.lane.b32.xlu0 %v180, 72
    %v1058 = vpop.permute.xlu0 %1057
    %1059 = vrot.lane.b32.xlu0 %v181, 72
    %v1060 = vpop.permute.xlu0 %1059
    %v1061 = vsel %vm198, %v1054, 0
    %v1063 = vsel %vm198, %v1056, 0
    %v1065 = vsel %vm198, %v1058, 0
    %v1067 = vsel %vm198, %v1060, 0
    %1069 = vmatprep.subr.mxu0 0.0
    %1070 = vmatpush1.xpose.msra.mxu0 %v1065
    %1071 = vmatprep.subr.mxu0 0.0
    %1072 = vmatpush1.xpose.msra.mxu0 %v1067
    %1073 = vmatprep.subr.mxu0 0.0
    %1074 = vmatpush1.xpose.msra.mxu0 0.0
    %1075 = vmatprep.subr.mxu0 0.0
    %1076 = vmatpush1.xpose.msra.mxu0 0.0
    %1077 = vmatprep.subr.mxu0 0.0
    %1078 = vmatpush1.xpose.msra.mxu0 0.0
    %1079 = vmatprep.subr.mxu0 0.0
    %1080 = vmatpush1.xpose.msra.mxu0 0.0
    %1081 = vmatprep.subr.mxu0 0.0
    %1082 = vmatpush1.xpose.msra.mxu0 0.0
    %1083 = vmatprep.subr.mxu0 0.0
    %1084 = vmatpush1.xpose.msra.mxu0 0.0
    %1085 = vmatprep.subr.mxu0 0.0
    %1086 = vmatpush1.xpose.msra.mxu0 0.0
    %1087 = vmatprep.subr.mxu0 0.0
    %1088 = vmatpush1.xpose.msra.mxu0 0.0
    %1089 = vmatprep.subr.mxu0 0.0
    %1090 = vmatpush1.xpose.msra.mxu0 0.0
    %1091 = vmatprep.subr.mxu0 0.0
    %1092 = vmatpush1.xpose.msra.mxu0 0.0
    %1093 = vmatprep.subr.mxu0 0.0
    %1094 = vmatpush1.xpose.msra.mxu0 0.0
    %1095 = vmatprep.subr.mxu0 0.0
    %1096 = vmatpush1.xpose.msra.mxu0 0.0
    %1097 = vmatprep.subr.mxu0 0.0
    %1098 = vmatpush1.xpose.msra.mxu0 0.0
    %1099 = vmatprep.subr.mxu0 0.0
    %1100 = vmatpush1.xpose.msra.mxu0 0.0
    %1101 = vmatprep.subr.mxu0 0.0
    %1102 = vmatpush1.xpose.msra.mxu0 0.0
    %1103 = vmatprep.subr.mxu0 0.0
    %1104 = vmatpush1.xpose.msra.mxu0 0.0
    %1105 = vmatprep.subr.mxu0 0.0
    %1106 = vmatpush1.xpose.msra.mxu0 0.0
    %1107 = vmatprep.subr.mxu0 0.0
    %1108 = vmatpush1.xpose.msra.mxu0 0.0
    %1109 = vmatprep.subr.mxu0 0.0
    %1110 = vmatpush1.xpose.msra.mxu0 0.0
    %1111 = vmatprep.subr.mxu0 0.0
    %1112 = vmatpush1.xpose.msra.mxu0 0.0
    %1113 = vmatprep.subr.mxu0 0.0
    %1114 = vmatpush1.xpose.msra.mxu0 0.0
    %1115 = vmatprep.subr.mxu0 0.0
    %1116 = vmatpush1.xpose.msra.mxu0 0.0
    %1117 = vmatprep.subr.mxu0 0.0
    %1118 = vmatpush1.xpose.msra.mxu0 0.0
    %1119 = vmatprep.subr.mxu0 0.0
    %1120 = vmatpush1.xpose.msra.mxu0 0.0
    %1121 = vmatprep.subr.mxu0 0.0
    %1122 = vmatpush1.xpose.msra.mxu0 0.0
    %1123 = vmatprep.subr.mxu0 0.0
    %1124 = vmatpush1.xpose.msra.mxu0 0.0
    %1125 = vmatprep.subr.mxu0 0.0
    %1126 = vmatpush1.xpose.msra.mxu0 0.0
    %1127 = vmatprep.subr.mxu0 0.0
    %1128 = vmatpush1.xpose.msra.mxu0 0.0
    %1129 = vmatprep.subr.mxu0 0.0
    %1130 = vmatpush1.xpose.msra.mxu0 0.0
    %1131 = vmatprep.subr.mxu0 0.0
    %1132 = vmatpush1.xpose.msra.mxu0 0.0
    %1133 = vmatprep.mubr.f32.mxu0 0.0
    %1134 = vmatmul.mubr.f32.gmra.mrb[0].mxu0 %v1061
    %v1135 = vpop.f32.mrb[0].mxu0
    %v1136 = vadd.f32 %v82, %v1135
    %v1137 = vpop.f32.mrb[0].mxu0
    %1138 = vmatprep.mubr.f32.mxu0 0.0
    %1139 = vmatmul.mubr.f32.gmra.mrb[0].mxu0 %v1063
    %v1140 = vpop.f32.mrb[0].mxu0
    %v1141 = vadd.f32 %v83, %v1140
    %v1142 = vpop.f32.mrb[0].mxu0
    %1143 = vdwg.mxu0
    %v1144 = vsel %vm284, %v1136, -inf
    %1145 = vmax.xlane.f32.xlu0 %v1144
    %v1146 = vpop.xlane.xlu0 %1145
    %v1147 = vsel %vm284, %v1141, -inf
    %1148 = vmax.xlane.f32.xlu0 %v1147
    %v1149 = vpop.xlane.xlu0 %1148
    %v1150 = vsub.f32 %v1136, %v1146
    %v1151 = vsub.f32 %v1141, %v1149
    %v1152 = vmul.f32 %v1150, 1.442695
    %v1153 = vpow.pop %v1152
    %v1154 = vmul.f32 %v1151, 1.442695
    %v1155 = vpow.pop %v1154
    %v1156 = vsel %vm284, %v1153, 0.0
    %1157 = vadd.xlane.f32.xlu0 %v1156
    %v1158 = vpop.xlane.xlu0 %1157
    %v1159 = vsel %vm284, %v1155, 0.0
    %1160 = vadd.xlane.f32.xlu0 %v1159
    %v1161 = vpop.xlane.xlu0 %1160
    %v1162 = vrcp.pop %v1158
    %v1163 = vrcp.pop %v1161
    %v1164 = vmul.f32 %v1153, %v1162
    %v1165 = vmul.f32 %v1155, %v1163
    %1166 = vrot.lane.b32.xlu0 %v190, 40
    %v1167 = vpop.permute.xlu0 %1166
    %1168 = vrot.lane.b32.xlu0 %v191, 40
    %v1169 = vpop.permute.xlu0 %1168
    %v1173 = vsel %vm284, %v1164, 0
    %v1176 = vsel %vm284, %v1165, 0
    %1178 = vmatprep.subr.mxu0 0.0
    %1179 = vmatpush1.msra.mxu0 %v1167
    %1180 = vmatprep.subr.mxu0 0.0
    %1181 = vmatpush1.msra.mxu0 %v1169
    %1182 = vmatprep.subr.mxu0 0.0
    %1183 = vmatpush1.msra.mxu0 0.0
    %1184 = vmatprep.subr.mxu0 0.0
    %1185 = vmatpush1.msra.mxu0 0.0
    %1186 = vmatprep.subr.mxu0 0.0
    %1187 = vmatpush1.msra.mxu0 0.0
    %1188 = vmatprep.subr.mxu0 0.0
    %1189 = vmatpush1.msra.mxu0 0.0
    %1190 = vmatprep.subr.mxu0 0.0
    %1191 = vmatpush1.msra.mxu0 0.0
    %1192 = vmatprep.subr.mxu0 0.0
    %1193 = vmatpush1.msra.mxu0 0.0
    %1194 = vmatprep.subr.mxu0 0.0
    %1195 = vmatpush1.msra.mxu0 0.0
    %1196 = vmatprep.subr.mxu0 0.0
    %1197 = vmatpush1.msra.mxu0 0.0
    %1198 = vmatprep.subr.mxu0 0.0
    %1199 = vmatpush1.msra.mxu0 0.0
    %1200 = vmatprep.subr.mxu0 0.0
    %1201 = vmatpush1.msra.mxu0 0.0
    %1202 = vmatprep.subr.mxu0 0.0
    %1203 = vmatpush1.msra.mxu0 0.0
    %1204 = vmatprep.subr.mxu0 0.0
    %1205 = vmatpush1.msra.mxu0 0.0
    %1206 = vmatprep.subr.mxu0 0.0
    %1207 = vmatpush1.msra.mxu0 0.0
    %1208 = vmatprep.subr.mxu0 0.0
    %1209 = vmatpush1.msra.mxu0 0.0
    %1210 = vmatprep.subr.mxu0 0.0
    %1211 = vmatpush1.msra.mxu0 0.0
    %1212 = vmatprep.subr.mxu0 0.0
    %1213 = vmatpush1.msra.mxu0 0.0
    %1214 = vmatprep.subr.mxu0 0.0
    %1215 = vmatpush1.msra.mxu0 0.0
    %1216 = vmatprep.subr.mxu0 0.0
    %1217 = vmatpush1.msra.mxu0 0.0
    %1218 = vmatprep.subr.mxu0 0.0
    %1219 = vmatpush1.msra.mxu0 0.0
    %1220 = vmatprep.subr.mxu0 0.0
    %1221 = vmatpush1.msra.mxu0 0.0
    %1222 = vmatprep.subr.mxu0 0.0
    %1223 = vmatpush1.msra.mxu0 0.0
    %1224 = vmatprep.subr.mxu0 0.0
    %1225 = vmatpush1.msra.mxu0 0.0
    %1226 = vmatprep.subr.mxu0 0.0
    %1227 = vmatpush1.msra.mxu0 0.0
    %1228 = vmatprep.subr.mxu0 0.0
    %1229 = vmatpush1.msra.mxu0 0.0
    %1230 = vmatprep.subr.mxu0 0.0
    %1231 = vmatpush1.msra.mxu0 0.0
    %1232 = vmatprep.subr.mxu0 0.0
    %1233 = vmatpush1.msra.mxu0 0.0
    %1234 = vmatprep.subr.mxu0 0.0
    %1235 = vmatpush1.msra.mxu0 0.0
    %1236 = vmatprep.subr.mxu0 0.0
    %1237 = vmatpush1.msra.mxu0 0.0
    %1238 = vmatprep.subr.mxu0 0.0
    %1239 = vmatpush1.msra.mxu0 0.0
    %1240 = vmatprep.subr.mxu0 0.0
    %1241 = vmatpush1.msra.mxu0 0.0
    %1242 = vmatprep.mubr.f32.mxu0 0.0
    %1243 = vmatmul.mubr.f32.gmra.mrb[0].mxu0 %v1173
    %v1244 = vpop.f32.mrb[0].mxu0
    %v1245 = vadd.f32 0.0, %v1244
    %v1246 = vpop.f32.mrb[0].mxu0
    %1247 = vmatprep.mubr.f32.mxu0 0.0
    %1248 = vmatmul.mubr.f32.gmra.mrb[0].mxu0 %v1176
    %v1249 = vpop.f32.mrb[0].mxu0
    %v1250 = vadd.f32 0.0, %v1249
    %v1251 = vpop.f32.mrb[0].mxu0
    %1252 = vdwg.mxu0
    %1254 = vrot.lane.b32.xlu0 %v79, 32
    %v1255 = vpop.permute.xlu0 %1254
    %v1258 = vsel %vm198, %v1245, 0
    %v1261 = vsel %vm198, %v1250, 0
    %1263 = vmatprep.subr.mxu0 0.0
    %1264 = vmatpush1.msra.mxu0 %v1255
    %1265 = vmatprep.subr.mxu0 0.0
    %1266 = vmatpush1.msra.mxu0 0.0
    %1267 = vmatprep.subr.mxu0 0.0
    %1268 = vmatpush1.msra.mxu0 0.0
    %1269 = vmatprep.subr.mxu0 0.0
    %1270 = vmatpush1.msra.mxu0 0.0
    %1271 = vmatprep.subr.mxu0 0.0
    %1272 = vmatpush1.msra.mxu0 0.0
    %1273 = vmatprep.subr.mxu0 0.0
    %1274 = vmatpush1.msra.mxu0 0.0
    %1275 = vmatprep.subr.mxu0 0.0
    %1276 = vmatpush1.msra.mxu0 0.0
    %1277 = vmatprep.subr.mxu0 0.0
    %1278 = vmatpush1.msra.mxu0 0.0
    %1279 = vmatprep.subr.mxu0 0.0
    %1280 = vmatpush1.msra.mxu0 0.0
    %1281 = vmatprep.subr.mxu0 0.0
    %1282 = vmatpush1.msra.mxu0 0.0
    %1283 = vmatprep.subr.mxu0 0.0
    %1284 = vmatpush1.msra.mxu0 0.0
    %1285 = vmatprep.subr.mxu0 0.0
    %1286 = vmatpush1.msra.mxu0 0.0
    %1287 = vmatprep.subr.mxu0 0.0
    %1288 = vmatpush1.msra.mxu0 0.0
    %1289 = vmatprep.subr.mxu0 0.0
    %1290 = vmatpush1.msra.mxu0 0.0
    %1291 = vmatprep.subr.mxu0 0.0
    %1292 = vmatpush1.msra.mxu0 0.0
    %1293 = vmatprep.subr.mxu0 0.0
    %1294 = vmatpush1.msra.mxu0 0.0
    %1295 = vmatprep.subr.mxu0 0.0
    %1296 = vmatpush1.msra.mxu0 0.0
    %1297 = vmatprep.subr.mxu0 0.0
    %1298 = vmatpush1.msra.mxu0 0.0
    %1299 = vmatprep.subr.mxu0 0.0
    %1300 = vmatpush1.msra.mxu0 0.0
    %1301 = vmatprep.subr.mxu0 0.0
    %1302 = vmatpush1.msra.mxu0 0.0
    %1303 = vmatprep.subr.mxu0 0.0
    %1304 = vmatpush1.msra.mxu0 0.0
    %1305 = vmatprep.subr.mxu0 0.0
    %1306 = vmatpush1.msra.mxu0 0.0
    %1307 = vmatprep.subr.mxu0 0.0
    %1308 = vmatpush1.msra.mxu0 0.0
    %1309 = vmatprep.subr.mxu0 0.0
    %1310 = vmatpush1.msra.mxu0 0.0
    %1311 = vmatprep.subr.mxu0 0.0
    %1312 = vmatpush1.msra.mxu0 0.0
    %1313 = vmatprep.subr.mxu0 0.0
    %1314 = vmatpush1.msra.mxu0 0.0
    %1315 = vmatprep.subr.mxu0 0.0
    %1316 = vmatpush1.msra.mxu0 0.0
    %1317 = vmatprep.subr.mxu0 0.0
    %1318 = vmatpush1.msra.mxu0 0.0
    %1319 = vmatprep.subr.mxu0 0.0
    %1320 = vmatpush1.msra.mxu0 0.0
    %1321 = vmatprep.subr.mxu0 0.0
    %1322 = vmatpush1.msra.mxu0 0.0
    %1323 = vmatprep.subr.mxu0 0.0
    %1324 = vmatpush1.msra.mxu0 0.0
    %1325 = vmatprep.subr.mxu0 0.0
    %1326 = vmatpush1.msra.mxu0 0.0
    %1327 = vmatprep.mubr.f32.mxu0 0.0
    %1328 = vmatmul.mubr.f32.gmra.mrb[0].mxu0 %v1258
    %v1329 = vpop.f32.mrb[0].mxu0
    %v1330 = vadd.f32 0.0, %v1329
    %v1331 = vpop.f32.mrb[0].mxu0
    %1332 = vmatprep.mubr.f32.mxu0 0.0
    %1333 = vmatmul.mubr.f32.gmra.mrb[0].mxu0 %v1261
    %v1334 = vpop.f32.mrb[0].mxu0
    %v1335 = vadd.f32 0.0, %v1334
    %v1336 = vpop.f32.mrb[0].mxu0
    %1337 = vdwg.mxu0
    %v1338 = vadd.f32 %v1051, %v1330
    %v1339 = vadd.f32 %v1052, %v1335
    %v1340 = vlaneseq
    %v1341 = vshrl.u32 %v1340, 7
    %v1342 = vsub.s32 3, %v1341
    %v1343 = vrot.slane %v81, %v1342
    %v1344 = vadd.f32 %v1338, %v1343
    %v1345 = vadd.f32 %v1339, %v1343
    %v1346 = vadd.f32 %v1344, %v71
    %v1347 = vadd.f32 %v1345, %v72
    %v1348 = vsel %vm84, %v1346, 0.0
    %1349 = vadd.xlane.f32.xlu0 %v1348
    %v1350 = vpop.xlane.xlu0 %1349
    %v1351 = vsel %vm84, %v1347, 0.0
    %1352 = vadd.xlane.f32.xlu0 %v1351
    %v1353 = vpop.xlane.xlu0 %1352
    %v1354 = vrcp.pop 32.0
    %v1355 = vmul.f32 %v1350, %v1354
    %v1356 = vmul.f32 %v1353, %v1354
    %v1357 = vsub.f32 %v1346, %v1355
    %v1358 = vsub.f32 %v1347, %v1356
    %v1359 = vmul.f32 %v1357, %v1357
    %v1360 = vmul.f32 %v1358, %v1358
    %v1361 = vsel %vm84, %v1359, 0.0
    %1362 = vadd.xlane.f32.xlu0 %v1361
    %v1363 = vpop.xlane.xlu0 %1362
    %v1364 = vsel %vm84, %v1360, 0.0
    %1365 = vadd.xlane.f32.xlu0 %v1364
    %v1366 = vpop.xlane.xlu0 %1365
    %v1367 = vmul.f32 %v1363, %v1354
    %v1368 = vmul.f32 %v1366, %v1354
    %v1369 = vadd.f32 %v1367, 1e-05
    %v1370 = vadd.f32 %v1368, 1e-05
    %v1371 = vrsqrt.pop %v1369
    %v1372 = vrsqrt.pop %v1370
    %v1373 = vmul.f32 %v1357, %v1371
    %v1374 = vmul.f32 %v1358, %v1372
    %v1375 = vlaneseq
    %v1376 = vshrl.u32 %v1375, 7
    %v1377 = vsub.s32 6, %v1376
    %v1378 = vrot.slane %v81, %v1377
    %v1379 = vmul.f32 %v1373, %v1378
    %v1380 = vmul.f32 %v1374, %v1378
    %v1381 = vlaneseq
    %v1382 = vshrl.u32 %v1381, 7
    %v1383 = vsub.s32 7, %v1382
    %v1384 = vrot.slane %v81, %v1383
    %v1385 = vadd.f32 %v1379, %v1384
    %v1386 = vadd.f32 %v1380, %v1384
    %v1387 = vlaneseq
    %v1388 = vshrl.u32 %v1387, 7
    %v1389 = vsub.s32 4, %v1388
    %v1390 = vrot.slane %v81, %v1389
    %v1392 = vsel %vm84, %v1385, 0
    %v1395 = vsel %vm84, %v1386, 0
    %1397 = vmatprep.subr.mxu0 0.0
    %1398 = vmatpush1.msra.mxu0 %v74
    %1399 = vmatprep.subr.mxu0 0.0
    %1400 = vmatpush1.msra.mxu0 %v76
    %1401 = vmatprep.subr.mxu0 0.0
    %1402 = vmatpush1.msra.mxu0 %v78
    %1403 = vmatprep.subr.mxu0 0.0
    %1404 = vmatpush1.msra.mxu0 %v80
    %1405 = vmatprep.subr.mxu0 0.0
    %1406 = vmatpush1.msra.mxu0 0.0
    %1407 = vmatprep.subr.mxu0 0.0
    %1408 = vmatpush1.msra.mxu0 0.0
    %1409 = vmatprep.subr.mxu0 0.0
    %1410 = vmatpush1.msra.mxu0 0.0
    %1411 = vmatprep.subr.mxu0 0.0
    %1412 = vmatpush1.msra.mxu0 0.0
    %1413 = vmatprep.subr.mxu0 0.0
    %1414 = vmatpush1.msra.mxu0 0.0
    %1415 = vmatprep.subr.mxu0 0.0
    %1416 = vmatpush1.msra.mxu0 0.0
    %1417 = vmatprep.subr.mxu0 0.0
    %1418 = vmatpush1.msra.mxu0 0.0
    %1419 = vmatprep.subr.mxu0 0.0
    %1420 = vmatpush1.msra.mxu0 0.0
    %1421 = vmatprep.subr.mxu0 0.0
    %1422 = vmatpush1.msra.mxu0 0.0
    %1423 = vmatprep.subr.mxu0 0.0
    %1424 = vmatpush1.msra.mxu0 0.0
    %1425 = vmatprep.subr.mxu0 0.0
    %1426 = vmatpush1.msra.mxu0 0.0
    %1427 = vmatprep.subr.mxu0 0.0
    %1428 = vmatpush1.msra.mxu0 0.0
    %1429 = vmatprep.subr.mxu0 0.0
    %1430 = vmatpush1.msra.mxu0 0.0
    %1431 = vmatprep.subr.mxu0 0.0
    %1432 = vmatpush1.msra.mxu0 0.0
    %1433 = vmatprep.subr.mxu0 0.0
    %1434 = vmatpush1.msra.mxu0 0.0
    %1435 = vmatprep.subr.mxu0 0.0
    %1436 = vmatpush1.msra.mxu0 0.0
    %1437 = vmatprep.subr.mxu0 0.0
    %1438 = vmatpush1.msra.mxu0 0.0
    %1439 = vmatprep.subr.mxu0 0.0
    %1440 = vmatpush1.msra.mxu0 0.0
    %1441 = vmatprep.subr.mxu0 0.0
    %1442 = vmatpush1.msra.mxu0 0.0
    %1443 = vmatprep.subr.mxu0 0.0
    %1444 = vmatpush1.msra.mxu0 0.0
    %1445 = vmatprep.subr.mxu0 0.0
    %1446 = vmatpush1.msra.mxu0 0.0
    %1447 = vmatprep.subr.mxu0 0.0
    %1448 = vmatpush1.msra.mxu0 0.0
    %1449 = vmatprep.subr.mxu0 0.0
    %1450 = vmatpush1.msra.mxu0 0.0
    %1451 = vmatprep.subr.mxu0 0.0
    %1452 = vmatpush1.msra.mxu0 0.0
    %1453 = vmatprep.subr.mxu0 0.0
    %1454 = vmatpush1.msra.mxu0 0.0
    %1455 = vmatprep.subr.mxu0 0.0
    %1456 = vmatpush1.msra.mxu0 0.0
    %1457 = vmatprep.subr.mxu0 0.0
    %1458 = vmatpush1.msra.mxu0 0.0
    %1459 = vmatprep.subr.mxu0 0.0
    %1460 = vmatpush1.msra.mxu0 0.0
    %1461 = vmatprep.mubr.f32.mxu0 0.0
    %1462 = vmatmul.mubr.f32.gmra.mrb[0].mxu0 %v1392
    %v1463 = vpop.f32.mrb[0].mxu0
    %v1464 = vadd.f32 %v1390, %v1463
    %v1465 = vpop.f32.mrb[0].mxu0
    %1466 = vmatprep.mubr.f32.mxu0 0.0
    %1467 = vmatmul.mubr.f32.gmra.mrb[0].mxu0 %v1395
    %v1468 = vpop.f32.mrb[0].mxu0
    %v1469 = vadd.f32 %v1390, %v1468
    %v1470 = vpop.f32.mrb[0].mxu0
    %1471 = vdwg.mxu0
    %v1472 = vmax.f32 %v1464, 0.0
    %v1473 = vmax.f32 %v1469, 0.0
    %v1474 = vlaneseq
    %v1475 = vshrl.u32 %v1474, 7
    %v1476 = vsub.s32 5, %v1475
    %v1477 = vrot.slane %v81, %v1476
    %1482 = vrot.lane.b32.xlu0 %v74, 96
    %v1483 = vpop.permute.xlu0 %1482
    %1484 = vrot.lane.b32.xlu0 %v76, 96
    %v1485 = vpop.permute.xlu0 %1484
    %1486 = vrot.lane.b32.xlu0 %v78, 96
    %v1487 = vpop.permute.xlu0 %1486
    %1488 = vrot.lane.b32.xlu0 %v80, 96
    %v1489 = vpop.permute.xlu0 %1488
    %v1495 = vsel %vm84, %v1472, 0
    %v1498 = vsel %vm84, %v1473, 0
    %1500 = vmatprep.subr.mxu0 0.0
    %1501 = vmatpush1.msra.mxu0 %v1483
    %1502 = vmatprep.subr.mxu0 0.0
    %1503 = vmatpush1.msra.mxu0 %v1485
    %1504 = vmatprep.subr.mxu0 0.0
    %1505 = vmatpush1.msra.mxu0 %v1487
    %1506 = vmatprep.subr.mxu0 0.0
    %1507 = vmatpush1.msra.mxu0 %v1489
    %1508 = vmatprep.subr.mxu0 0.0
    %1509 = vmatpush1.msra.mxu0 0.0
    %1510 = vmatprep.subr.mxu0 0.0
    %1511 = vmatpush1.msra.mxu0 0.0
    %1512 = vmatprep.subr.mxu0 0.0
    %1513 = vmatpush1.msra.mxu0 0.0
    %1514 = vmatprep.subr.mxu0 0.0
    %1515 = vmatpush1.msra.mxu0 0.0
    %1516 = vmatprep.subr.mxu0 0.0
    %1517 = vmatpush1.msra.mxu0 0.0
    %1518 = vmatprep.subr.mxu0 0.0
    %1519 = vmatpush1.msra.mxu0 0.0
    %1520 = vmatprep.subr.mxu0 0.0
    %1521 = vmatpush1.msra.mxu0 0.0
    %1522 = vmatprep.subr.mxu0 0.0
    %1523 = vmatpush1.msra.mxu0 0.0
    %1524 = vmatprep.subr.mxu0 0.0
    %1525 = vmatpush1.msra.mxu0 0.0
    %1526 = vmatprep.subr.mxu0 0.0
    %1527 = vmatpush1.msra.mxu0 0.0
    %1528 = vmatprep.subr.mxu0 0.0
    %1529 = vmatpush1.msra.mxu0 0.0
    %1530 = vmatprep.subr.mxu0 0.0
    %1531 = vmatpush1.msra.mxu0 0.0
    %1532 = vmatprep.subr.mxu0 0.0
    %1533 = vmatpush1.msra.mxu0 0.0
    %1534 = vmatprep.subr.mxu0 0.0
    %1535 = vmatpush1.msra.mxu0 0.0
    %1536 = vmatprep.subr.mxu0 0.0
    %1537 = vmatpush1.msra.mxu0 0.0
    %1538 = vmatprep.subr.mxu0 0.0
    %1539 = vmatpush1.msra.mxu0 0.0
    %1540 = vmatprep.subr.mxu0 0.0
    %1541 = vmatpush1.msra.mxu0 0.0
    %1542 = vmatprep.subr.mxu0 0.0
    %1543 = vmatpush1.msra.mxu0 0.0
    %1544 = vmatprep.subr.mxu0 0.0
    %1545 = vmatpush1.msra.mxu0 0.0
    %1546 = vmatprep.subr.mxu0 0.0
    %1547 = vmatpush1.msra.mxu0 0.0
    %1548 = vmatprep.subr.mxu0 0.0
    %1549 = vmatpush1.msra.mxu0 0.0
    %1550 = vmatprep.subr.mxu0 0.0
    %1551 = vmatpush1.msra.mxu0 0.0
    %1552 = vmatprep.subr.mxu0 0.0
    %1553 = vmatpush1.msra.mxu0 0.0
    %1554 = vmatprep.subr.mxu0 0.0
    %1555 = vmatpush1.msra.mxu0 0.0
    %1556 = vmatprep.subr.mxu0 0.0
    %1557 = vmatpush1.msra.mxu0 0.0
    %1558 = vmatprep.subr.mxu0 0.0
    %1559 = vmatpush1.msra.mxu0 0.0
    %1560 = vmatprep.subr.mxu0 0.0
    %1561 = vmatpush1.msra.mxu0 0.0
    %1562 = vmatprep.subr.mxu0 0.0
    %1563 = vmatpush1.msra.mxu0 0.0
    %1564 = vmatprep.mubr.f32.mxu0 0.0
    %1565 = vmatmul.mubr.f32.gmra.mrb[0].mxu0 %v1495
    %v1566 = vpop.f32.mrb[0].mxu0
    %v1567 = vadd.f32 %v1477, %v1566
    %v1568 = vpop.f32.mrb[0].mxu0
    %1569 = vmatprep.mubr.f32.mxu0 0.0
    %1570 = vmatmul.mubr.f32.gmra.mrb[0].mxu0 %v1498
    %v1571 = vpop.f32.mrb[0].mxu0
    %v1572 = vadd.f32 %v1477, %v1571
    %v1573 = vpop.f32.mrb[0].mxu0
    %1574 = vdwg.mxu0
    %v1575 = vadd.f32 %v1567, %v1385
    %v1576 = vadd.f32 %v1572, %v1386
    %v1577 = vsel %vm84, %v1575, 0.0
    %1578 = vadd.xlane.f32.xlu0 %v1577
    %v1579 = vpop.xlane.xlu0 %1578
    %v1580 = vsel %vm84, %v1576, 0.0
    %1581 = vadd.xlane.f32.xlu0 %v1580
    %v1582 = vpop.xlane.xlu0 %1581
    %v1583 = vmul.f32 %v1579, %v1354
    %v1584 = vmul.f32 %v1582, %v1354
    %v1585 = vsub.f32 %v1575, %v1583
    %v1586 = vsub.f32 %v1576, %v1584
    %v1587 = vmul.f32 %v1585, %v1585
    %v1588 = vmul.f32 %v1586, %v1586
    %v1589 = vsel %vm84, %v1587, 0.0
    %1590 = vadd.xlane.f32.xlu0 %v1589
    %v1591 = vpop.xlane.xlu0 %1590
    %v1592 = vsel %vm84, %v1588, 0.0
    %1593 = vadd.xlane.f32.xlu0 %v1592
    %v1594 = vpop.xlane.xlu0 %1593
    %v1595 = vmul.f32 %v1591, %v1354
    %v1596 = vmul.f32 %v1594, %v1354
    %v1597 = vadd.f32 %v1595, 1e-05
    %v1598 = vadd.f32 %v1596, 1e-05
    %v1599 = vrsqrt.pop %v1597
    %v1600 = vrsqrt.pop %v1598
    %v1601 = vmul.f32 %v1585, %v1599
    %v1602 = vmul.f32 %v1586, %v1600
    %v1603 = vmul.f32 %v1601, %v1378
    %v1604 = vmul.f32 %v1602, %v1378
    %v1605 = vadd.f32 %v1603, %v1384
    %v1606 = vadd.f32 %v1604, %v1384
    %1607 = vst.msk [vmem:[#allocation10] sm:$0xff] %vm84, %v1605
    %1608 = vst.msk [vmem:[#allocation10 + $0x8] sm:$0xff] %vm84, %v1606
    // Predicated region
    $region34: #{tpu_custom_call.1} parent=1 // pred_check
      _
    $region35: #{tpu_custom_call.1} parent=1 // pred_check_branch
      %1610 = sbr.rel (0) target = $region37
    $region36: #{tpu_custom_call.1} parent=1 // pred_region
      %s1612 = ssub.s32 256, 256
      %1613 = vsyncadd [#allocation4], %s1612
      %s1614 = sshll.u32 [#allocation10], 4
      %s1615 = int_to_ptr.vmem [resolvable:$true] %s1614
      %1620 = dma.vmem_to_hbm [thread:$0]  %s1615, 256, %s4, [#allocation4], 128, 128, 8
    $region37: #{tpu_custom_call.1} parent=1 // pred_fallthru
      _
    // Predicated region
    $region38: #{tpu_custom_call.1} parent=1 // pred_check
      _
    $region39: #{tpu_custom_call.1} parent=1 // pred_check_branch
      %1622 = sbr.rel (0) target = $region41
    $region40: #{tpu_custom_call.1} parent=1 // pred_region
      %1623 = dma.done [#allocation4], 256
    $region41: #{tpu_custom_call.1} parent=1 // pred_fallthru
      _
    %1624 = vsyncpa [#allocation3], 1
    %1625 = vsyncpa [#allocation6], 1
    %1626 = vsyncpa [#allocation9], 1
    %1627 = vsyncpa [#allocation4], 1

</llo_original>
